<compile_context>
chip_gen: v6e
topology: v6e:2x2x1
jax: 0.10.0
libtpu: 0.0.40
codegen_flags: <defaults>
</compile_context>

<pallas_src>
import jax
import jax.numpy as jnp
from jax.experimental import pallas as pl
from jax.experimental.pallas import tpu as pltpu


def _conv_out(hw, k, stride, pad):
    return (hw + 2 * pad - k) // stride + 1


def _col_operator(w, stride, win, pw, batch):
    """Column shift/select operator with the conv weights folded in, block-diagonal
    over batch: Gbd[ky, n*Cin*Win + ci*Win + c, n*Cout*Wo + co*Wo + v]."""
    cout, cin, kh, kw = w.shape
    wo = _conv_out(win, kw, stride, pw)
    kx = jnp.arange(kw)[:, None, None]
    c = jnp.arange(win)[None, :, None]
    v = jnp.arange(wo)[None, None, :]
    cb = (c == stride * v + kx - pw).astype(jnp.float32)             # (KW, Win, Wo)
    g = jnp.einsum('oiyx,xcv->yicov', w.astype(jnp.float32), cb,
                   precision=jax.lax.Precision.HIGHEST)
    g = g.reshape(kh, cin * win, cout * wo)
    eye = jnp.eye(batch, dtype=jnp.float32)
    g_bd = jnp.einsum('nm,kij->knimj', eye, g).reshape(
        kh, batch * cin * win, batch * cout * wo)
    return g_bd.astype(jnp.bfloat16), wo


def _row_operator(hin, kh, stride, ph, out_rows):
    """Rflat[ki*len(out_rows) + m, h] = 1 iff h == stride*out_rows[m] + ki - ph.
    Out-of-range targets give all-zero rows (this encodes the zero padding)."""
    oh = jnp.asarray(out_rows, jnp.int32)[None, :, None]
    ki = jnp.arange(kh)[:, None, None]
    ih = jnp.arange(hin)[None, None, :]
    r = (ih == stride * oh + ki - ph).astype(jnp.float32)            # (KH, M, Hin)
    return r.reshape(kh * len(out_rows), hin).astype(jnp.bfloat16)


def _bias_row(b, wo, batch):
    return jnp.tile(jnp.repeat(b.astype(jnp.float32), wo), batch)[None, :]


def make_model(params, batch, cin, h, w):
    # ---- static geometry (matches the PyTorch module) ----
    kh0, s0, ph0, pw0 = 7, 2, 2, 3
    kh1, s1, pw1 = 3, 2, 1
    kh2, s2_, pw2 = 5, 1, 2
    c3 = params["conv2_w"].shape[0]                                   # 3
    h1, w1 = _conv_out(h, 7, 2, 2), _conv_out(w, 7, 2, 3)             # 15, 16
    h2, w2 = _conv_out(h1, 3, 2, 1), _conv_out(w1, 3, 2, 1)           # 8, 8
    h3, w3 = _conv_out(h2, 5, 1, 2), _conv_out(w2, 5, 1, 2)           # 8, 8
    n_even = (h1 + 1) // 2                                            # 8 even rows of v1
    h1p = 16                                  # pad layer-0 row block to a full sublane tile

    # ---- operands: built ONCE here, baked into the jitted forward as constants ----
    # Layer-0 output rows come out even-first/odd-second so layer 1 can row-gather with
    # contiguous slices; the dummy 16th selector row is all zeros.
    out_rows0 = tuple(range(0, h1, 2)) + tuple(range(1, h1, 2)) + (-10**6,) * (h1p - h1)
    r0 = _row_operator(h, kh0, s0, ph0, out_rows0)                    # (7*16, 32)  bf16
    g0, _ = _col_operator(params["conv_w"], s0, w, pw0, batch)        # (7, 192, 32)
    b0 = _bias_row(params["conv_b"], w1, batch)                       # (1, 32)     f32
    g1, _ = _col_operator(params["conv1_w"], s1, w1, pw1, batch)      # (3, 32, 160)
    b1 = _bias_row(params["conv1_b"], w2, batch)                      # (1, 160)
    g2, _ = _col_operator(params["conv2_w"], s2_, w2, pw2, batch)     # (5, 160, 48)
    b2 = _bias_row(params["conv2_b"], w3, batch)                      # (1, 48)

    lanes_in = batch * cin * w                                        # 192
    lanes_out = batch * c3 * w3                                       # 48
    bf16, f32 = jnp.bfloat16, jnp.float32

    def kernel(x_ref, r0_ref, g0_ref, b0_ref, g1_ref, b1_ref, g2_ref, b2_ref, o_ref):
        # ---- layer 0: 7x7 s2 -- one fused row-select matmul + 7 tap matmuls ----
        rows0 = jnp.dot(r0_ref[...], x_ref[...],
                        preferred_element_type=f32).astype(bf16)      # (7*16, 192)
        acc1 = jnp.dot(rows0[0:h1p], g0_ref[0],
                       preferred_element_type=f32) + b0_ref[...]      # (16, 32)
        for ki in range(1, kh0):
            acc1 = acc1 + jnp.dot(rows0[ki * h1p:(ki + 1) * h1p], g0_ref[ki],
                                  preferred_element_type=f32)
        # acc1 rows = v1 rows [0,2,...,14 | 1,3,...,13 | dummy]

        # ---- layer 1: 3x3 s2 -- row gather = contiguous slices of even/odd blocks ----
        v1 = acc1.astype(bf16)
        even = v1[0:n_even]                        # v1 rows 2*oh     (oh = 0..7)
        odd = v1[n_even:h1]                        # v1 rows 2*oh + 1 (oh = 0..6)
        zrow = jnp.zeros((1, even.shape[1]), bf16)
        taps1 = (jnp.concatenate([zrow, odd], axis=0),    # ki=0: rows 2*oh - 1
                 even,                                    # ki=1: rows 2*oh
                 jnp.concatenate([odd, zrow], axis=0))    # ki=2: rows 2*oh + 1
        acc2 = jnp.dot(taps1[0], g1_ref[0],
                       preferred_element_type=f32) + b1_ref[...]      # (8, 160)
        for ki in range(1, kh1):
            acc2 = acc2 + jnp.dot(taps1[ki], g1_ref[ki], preferred_element_type=f32)

        # ---- layer 2: 5x5 s1 -- row gather = shifted slices of a zero-padded value ----
        v2 = acc2.astype(bf16)
        zpad = jnp.zeros((pw2, v2.shape[1]), bf16)
        v2p = jnp.concatenate([zpad, v2, zpad], axis=0)               # (12, 160)
        acc3 = jnp.dot(v2p[0:h3], g2_ref[0],
                       preferred_element_type=f32) + b2_ref[...]      # (8, 48)
        for ki in range(1, kh2):
            acc3 = acc3 + jnp.dot(v2p[ki:ki + h3], g2_ref[ki],
                                  preferred_element_type=f32)

        # ---- fused hardswish tail: v3 * clamp(v3 + 3, 0, 6) * (1/6) ----
        o_ref[...] = (acc3 * jnp.clip(acc3 + 3.0, 0.0, 6.0)
                      * (1.0 / 6.0)).astype(o_ref.dtype)

    def _resident(shape):
        nd = len(shape)
        return pl.BlockSpec(shape, lambda i: (0,) * nd)

    consts = (r0, g0, b0, g1, b1, g2, b2)
    flops = 2 * (r0.shape[0] * r0.shape[1] * lanes_in
                 + kh0 * h1p * g0.shape[1] * g0.shape[2]
                 + kh1 * h2 * g1.shape[1] * g1.shape[2]
                 + kh2 * h3 * g2.shape[1] * g2.shape[2])
    bytes_accessed = (2 * h * lanes_in + 4 * h3 * lanes_out
                      + sum(int(a.size) * a.dtype.itemsize for a in consts))

    fused = pl.pallas_call(
        kernel,
        out_shape=jax.ShapeDtypeStruct((h3, lanes_out), jnp.float32),
        grid=(1,),                                 # single step: whole batch at once
        in_specs=[_resident((h, lanes_in))] + [_resident(a.shape) for a in consts],
        out_specs=_resident((h3, lanes_out)),
        compiler_params=pltpu.CompilerParams(dimension_semantics=("arbitrary",)),
        cost_estimate=pl.CostEstimate(flops=int(flops), transcendentals=0,
                                      bytes_accessed=int(bytes_accessed)),
    )

    @jax.jit
    def forward(x):
        # batch+channels along lanes: xcat[h, n*(Cin*W) + ci*W + w] = x[n, ci, h, w]
        xcat = jnp.transpose(x, (2, 0, 1, 3)).reshape(h, lanes_in).astype(bf16)
        out_cat = fused(xcat, *consts)
        # out_cat[oh, n*(C3*Wo) + co*Wo + ow]  ->  (N, C3, Ho, Wo)
        return out_cat.reshape(h3, batch, c3, w3).transpose(1, 2, 0, 3).astype(x.dtype)

    return forward


def _reference_forward(x, params):
    dn = ('NCHW', 'OIHW', 'NCHW')

    def conv(a, wgt, b, stride, pad):
        y = jax.lax.conv_general_dilated(
            a, wgt, window_strides=(stride, stride),
            padding=[(pad[0], pad[0]), (pad[1], pad[1])],
            dimension_numbers=dn, precision=jax.lax.Precision.HIGHEST)
        return y + b[None, :, None, None]

    v1 = conv(x, params["conv_w"], params["conv_b"], 2, (2, 3))
    v2 = conv(v1, params["conv1_w"], params["conv1_b"], 2, (1, 1))
    v3 = conv(v2, params["conv2_w"], params["conv2_b"], 1, (2, 2))
    return v3 * jnp.clip(v3 + 3.0, 0.0, 6.0) / 6.0


if __name__ == "__main__":
    key = jax.random.PRNGKey(0)
    keys = jax.random.split(key, 7)

    # Small shapes consistent with the module (NCHW, 3 input channels).
    N, Cin, H, W = 2, 3, 32, 32
    x = jax.random.normal(keys[0], (N, Cin, H, W), jnp.float32)

    # TODO(synk): the original PyTorch module declares conv1 = Conv2d(3, 10, ...) but feeds
    # it the 1-channel output of `conv` (its forward errors with a channel mismatch);
    # conv1 is instantiated with in_channels=1 here so the pipeline is executable.
    params = {
        "conv_w":  jax.random.normal(keys[1], (1, 3, 7, 7), jnp.float32) * 0.05,
        "conv_b":  jax.random.normal(keys[2], (1,), jnp.float32) * 0.05,
        "conv1_w": jax.random.normal(keys[3], (10, 1, 3, 3), jnp.float32) * 0.2,
        "conv1_b": jax.random.normal(keys[4], (10,), jnp.float32) * 0.2,
        "conv2_w": jax.random.normal(keys[5], (3, 10, 5, 5), jnp.float32) * 0.1,
        "conv2_b": jax.random.normal(keys[6], (3,), jnp.float32) * 0.1,
    }

    forward = make_model(params, N, Cin, H, W)   # operand construction hoisted to init
    out = forward(x)
    jax.block_until_ready(out)
    assert out.shape == (2, 3, 8, 8), out.shape

    ref = _reference_forward(x, params)
    max_err = float(jnp.max(jnp.abs(out - ref)))
    # bf16 matmul operands (f32 accumulation) quantize inputs/weights to ~0.2% rel;
    # three stacked convs keep the absolute error well below this bound.
    assert max_err < 5e-2, max_err

    print("KERNEL_OK")
</pallas_src>

<mosaic_0001>
module attributes {stable_mosaic.version = 11 : i64} {
  func.func @kernel(%arg0: i32, %arg1: memref<32x192xbf16, #tpu.memory_space<vmem>>, %arg2: memref<112x32xbf16, #tpu.memory_space<vmem>>, %arg3: memref<7x192x32xbf16, #tpu.memory_space<vmem>>, %arg4: memref<1x32xf32, #tpu.memory_space<vmem>>, %arg5: memref<3x32x160xbf16, #tpu.memory_space<vmem>>, %arg6: memref<1x160xf32, #tpu.memory_space<vmem>>, %arg7: memref<5x160x48xbf16, #tpu.memory_space<vmem>>, %arg8: memref<1x48xf32, #tpu.memory_space<vmem>>, %arg9: memref<8x48xf32, #tpu.memory_space<vmem>>) attributes {dimension_semantics = [#tpu.dimension_semantics<arbitrary>], iteration_bounds = array<i64: 1>, scalar_prefetch = 0 : i64, scratch_operands = 0 : i64, tpu.core_type = #tpu.core_type<tc>, window_params = [{pipeline_mode = #tpu.pipeline_mode<synchronous>, transform_indices = @transform_0, window_bounds = array<i64: 32, 192>}, {pipeline_mode = #tpu.pipeline_mode<synchronous>, transform_indices = @transform_1, window_bounds = array<i64: 112, 32>}, {pipeline_mode = #tpu.pipeline_mode<synchronous>, transform_indices = @transform_2, window_bounds = array<i64: 7, 192, 32>}, {pipeline_mode = #tpu.pipeline_mode<synchronous>, transform_indices = @transform_3, window_bounds = array<i64: 1, 32>}, {pipeline_mode = #tpu.pipeline_mode<synchronous>, transform_indices = @transform_4, window_bounds = array<i64: 3, 32, 160>}, {pipeline_mode = #tpu.pipeline_mode<synchronous>, transform_indices = @transform_5, window_bounds = array<i64: 1, 160>}, {pipeline_mode = #tpu.pipeline_mode<synchronous>, transform_indices = @transform_6, window_bounds = array<i64: 5, 160, 48>}, {pipeline_mode = #tpu.pipeline_mode<synchronous>, transform_indices = @transform_7, window_bounds = array<i64: 1, 48>}, {pipeline_mode = #tpu.pipeline_mode<synchronous>, transform_indices = @transform_8, window_bounds = array<i64: 8, 48>}]} {
    %c0 = arith.constant 0 : index
    %c0_0 = arith.constant 0 : index
    %0 = vector.load %arg2[%c0, %c0_0] : memref<112x32xbf16, #tpu.memory_space<vmem>>, vector<112x32xbf16>
    %c0_1 = arith.constant 0 : index
    %c0_2 = arith.constant 0 : index
    %1 = vector.load %arg1[%c0_1, %c0_2] : memref<32x192xbf16, #tpu.memory_space<vmem>>, vector<32x192xbf16>
    %cst = arith.constant dense<0.000000e+00> : vector<112x192xf32>
    %2 = tpu.matmul %0, %1, %cst {dimension_numbers = #tpu.dot_dimension_numbers<[1], [0], [0], [1], [0, 0, 1, 1], [], []>} : vector<112x32xbf16>, vector<32x192xbf16>, vector<112x192xf32> -> vector<112x192xf32>
    %3 = arith.truncf %2 : vector<112x192xf32> to vector<112x192xbf16>
    %4 = vector.extract_strided_slice %3 {offsets = [0, 0], sizes = [16, 192], strides = [1, 1]} : vector<112x192xbf16> to vector<16x192xbf16>
    %c0_3 = arith.constant 0 : index
    %c0_4 = arith.constant 0 : index
    %c0_5 = arith.constant 0 : index
    %5 = vector.load %arg3[%c0_3, %c0_4, %c0_5] : memref<7x192x32xbf16, #tpu.memory_space<vmem>>, vector<1x192x32xbf16>
    %6 = vector.shape_cast %5 : vector<1x192x32xbf16> to vector<192x32xbf16>
    %cst_6 = arith.constant dense<0.000000e+00> : vector<16x32xf32>
    %7 = tpu.matmul %4, %6, %cst_6 {dimension_numbers = #tpu.dot_dimension_numbers<[1], [0], [0], [1], [0, 0, 1, 1], [], []>} : vector<16x192xbf16>, vector<192x32xbf16>, vector<16x32xf32> -> vector<16x32xf32>
    %c0_7 = arith.constant 0 : index
    %c0_8 = arith.constant 0 : index
    %8 = vector.load %arg4[%c0_7, %c0_8] : memref<1x32xf32, #tpu.memory_space<vmem>>, vector<1x32xf32>
    %9 = vector.broadcast %8 : vector<1x32xf32> to vector<16x32xf32>
    %10 = arith.addf %7, %9 : vector<16x32xf32>
    %11 = vector.extract_strided_slice %3 {offsets = [16, 0], sizes = [16, 192], strides = [1, 1]} : vector<112x192xbf16> to vector<16x192xbf16>
    %c1 = arith.constant 1 : index
    %c0_9 = arith.constant 0 : index
    %c0_10 = arith.constant 0 : index
    %12 = vector.load %arg3[%c1, %c0_9, %c0_10] : memref<7x192x32xbf16, #tpu.memory_space<vmem>>, vector<1x192x32xbf16>
    %13 = vector.shape_cast %12 : vector<1x192x32xbf16> to vector<192x32xbf16>
    %cst_11 = arith.constant dense<0.000000e+00> : vector<16x32xf32>
    %14 = tpu.matmul %11, %13, %cst_11 {dimension_numbers = #tpu.dot_dimension_numbers<[1], [0], [0], [1], [0, 0, 1, 1], [], []>} : vector<16x192xbf16>, vector<192x32xbf16>, vector<16x32xf32> -> vector<16x32xf32>
    %15 = arith.addf %10, %14 : vector<16x32xf32>
    %16 = vector.extract_strided_slice %3 {offsets = [32, 0], sizes = [16, 192], strides = [1, 1]} : vector<112x192xbf16> to vector<16x192xbf16>
    %c2 = arith.constant 2 : index
    %c0_12 = arith.constant 0 : index
    %c0_13 = arith.constant 0 : index
    %17 = vector.load %arg3[%c2, %c0_12, %c0_13] : memref<7x192x32xbf16, #tpu.memory_space<vmem>>, vector<1x192x32xbf16>
    %18 = vector.shape_cast %17 : vector<1x192x32xbf16> to vector<192x32xbf16>
    %cst_14 = arith.constant dense<0.000000e+00> : vector<16x32xf32>
    %19 = tpu.matmul %16, %18, %cst_14 {dimension_numbers = #tpu.dot_dimension_numbers<[1], [0], [0], [1], [0, 0, 1, 1], [], []>} : vector<16x192xbf16>, vector<192x32xbf16>, vector<16x32xf32> -> vector<16x32xf32>
    %20 = arith.addf %15, %19 : vector<16x32xf32>
    %21 = vector.extract_strided_slice %3 {offsets = [48, 0], sizes = [16, 192], strides = [1, 1]} : vector<112x192xbf16> to vector<16x192xbf16>
    %c3 = arith.constant 3 : index
    %c0_15 = arith.constant 0 : index
    %c0_16 = arith.constant 0 : index
    %22 = vector.load %arg3[%c3, %c0_15, %c0_16] : memref<7x192x32xbf16, #tpu.memory_space<vmem>>, vector<1x192x32xbf16>
    %23 = vector.shape_cast %22 : vector<1x192x32xbf16> to vector<192x32xbf16>
    %cst_17 = arith.constant dense<0.000000e+00> : vector<16x32xf32>
    %24 = tpu.matmul %21, %23, %cst_17 {dimension_numbers = #tpu.dot_dimension_numbers<[1], [0], [0], [1], [0, 0, 1, 1], [], []>} : vector<16x192xbf16>, vector<192x32xbf16>, vector<16x32xf32> -> vector<16x32xf32>
    %25 = arith.addf %20, %24 : vector<16x32xf32>
    %26 = vector.extract_strided_slice %3 {offsets = [64, 0], sizes = [16, 192], strides = [1, 1]} : vector<112x192xbf16> to vector<16x192xbf16>
    %c4 = arith.constant 4 : index
    %c0_18 = arith.constant 0 : index
    %c0_19 = arith.constant 0 : index
    %27 = vector.load %arg3[%c4, %c0_18, %c0_19] : memref<7x192x32xbf16, #tpu.memory_space<vmem>>, vector<1x192x32xbf16>
    %28 = vector.shape_cast %27 : vector<1x192x32xbf16> to vector<192x32xbf16>
    %cst_20 = arith.constant dense<0.000000e+00> : vector<16x32xf32>
    %29 = tpu.matmul %26, %28, %cst_20 {dimension_numbers = #tpu.dot_dimension_numbers<[1], [0], [0], [1], [0, 0, 1, 1], [], []>} : vector<16x192xbf16>, vector<192x32xbf16>, vector<16x32xf32> -> vector<16x32xf32>
    %30 = arith.addf %25, %29 : vector<16x32xf32>
    %31 = vector.extract_strided_slice %3 {offsets = [80, 0], sizes = [16, 192], strides = [1, 1]} : vector<112x192xbf16> to vector<16x192xbf16>
    %c5 = arith.constant 5 : index
    %c0_21 = arith.constant 0 : index
    %c0_22 = arith.constant 0 : index
    %32 = vector.load %arg3[%c5, %c0_21, %c0_22] : memref<7x192x32xbf16, #tpu.memory_space<vmem>>, vector<1x192x32xbf16>
    %33 = vector.shape_cast %32 : vector<1x192x32xbf16> to vector<192x32xbf16>
    %cst_23 = arith.constant dense<0.000000e+00> : vector<16x32xf32>
    %34 = tpu.matmul %31, %33, %cst_23 {dimension_numbers = #tpu.dot_dimension_numbers<[1], [0], [0], [1], [0, 0, 1, 1], [], []>} : vector<16x192xbf16>, vector<192x32xbf16>, vector<16x32xf32> -> vector<16x32xf32>
    %35 = arith.addf %30, %34 : vector<16x32xf32>
    %36 = vector.extract_strided_slice %3 {offsets = [96, 0], sizes = [16, 192], strides = [1, 1]} : vector<112x192xbf16> to vector<16x192xbf16>
    %c6 = arith.constant 6 : index
    %c0_24 = arith.constant 0 : index
    %c0_25 = arith.constant 0 : index
    %37 = vector.load %arg3[%c6, %c0_24, %c0_25] : memref<7x192x32xbf16, #tpu.memory_space<vmem>>, vector<1x192x32xbf16>
    %38 = vector.shape_cast %37 : vector<1x192x32xbf16> to vector<192x32xbf16>
    %cst_26 = arith.constant dense<0.000000e+00> : vector<16x32xf32>
    %39 = tpu.matmul %36, %38, %cst_26 {dimension_numbers = #tpu.dot_dimension_numbers<[1], [0], [0], [1], [0, 0, 1, 1], [], []>} : vector<16x192xbf16>, vector<192x32xbf16>, vector<16x32xf32> -> vector<16x32xf32>
    %40 = arith.addf %35, %39 : vector<16x32xf32>
    %41 = arith.truncf %40 : vector<16x32xf32> to vector<16x32xbf16>
    %42 = vector.extract_strided_slice %41 {offsets = [0, 0], sizes = [8, 32], strides = [1, 1]} : vector<16x32xbf16> to vector<8x32xbf16>
    %43 = vector.extract_strided_slice %41 {offsets = [8, 0], sizes = [7, 32], strides = [1, 1]} : vector<16x32xbf16> to vector<7x32xbf16>
    %cst_27 = arith.constant 0.000000e+00 : bf16
    %44 = vector.broadcast %cst_27 : bf16 to vector<1x32xbf16>
    %45 = tpu.concatenate %44, %43 in 0 : vector<1x32xbf16>, vector<7x32xbf16> -> vector<8x32xbf16>
    %46 = tpu.concatenate %43, %44 in 0 : vector<7x32xbf16>, vector<1x32xbf16> -> vector<8x32xbf16>
    %c0_28 = arith.constant 0 : index
    %c0_29 = arith.constant 0 : index
    %c0_30 = arith.constant 0 : index
    %47 = vector.load %arg5[%c0_28, %c0_29, %c0_30] : memref<3x32x160xbf16, #tpu.memory_space<vmem>>, vector<1x32x160xbf16>
    %48 = vector.shape_cast %47 : vector<1x32x160xbf16> to vector<32x160xbf16>
    %cst_31 = arith.constant dense<0.000000e+00> : vector<8x160xf32>
    %49 = tpu.matmul %45, %48, %cst_31 {dimension_numbers = #tpu.dot_dimension_numbers<[1], [0], [0], [1], [0, 0, 1, 1], [], []>} : vector<8x32xbf16>, vector<32x160xbf16>, vector<8x160xf32> -> vector<8x160xf32>
    %c0_32 = arith.constant 0 : index
    %c0_33 = arith.constant 0 : index
    %50 = vector.load %arg6[%c0_32, %c0_33] : memref<1x160xf32, #tpu.memory_space<vmem>>, vector<1x160xf32>
    %51 = vector.broadcast %50 : vector<1x160xf32> to vector<8x160xf32>
    %52 = arith.addf %49, %51 : vector<8x160xf32>
    %c1_34 = arith.constant 1 : index
    %c0_35 = arith.constant 0 : index
    %c0_36 = arith.constant 0 : index
    %53 = vector.load %arg5[%c1_34, %c0_35, %c0_36] : memref<3x32x160xbf16, #tpu.memory_space<vmem>>, vector<1x32x160xbf16>
    %54 = vector.shape_cast %53 : vector<1x32x160xbf16> to vector<32x160xbf16>
    %cst_37 = arith.constant dense<0.000000e+00> : vector<8x160xf32>
    %55 = tpu.matmul %42, %54, %cst_37 {dimension_numbers = #tpu.dot_dimension_numbers<[1], [0], [0], [1], [0, 0, 1, 1], [], []>} : vector<8x32xbf16>, vector<32x160xbf16>, vector<8x160xf32> -> vector<8x160xf32>
    %56 = arith.addf %52, %55 : vector<8x160xf32>
    %c2_38 = arith.constant 2 : index
    %c0_39 = arith.constant 0 : index
    %c0_40 = arith.constant 0 : index
    %57 = vector.load %arg5[%c2_38, %c0_39, %c0_40] : memref<3x32x160xbf16, #tpu.memory_space<vmem>>, vector<1x32x160xbf16>
    %58 = vector.shape_cast %57 : vector<1x32x160xbf16> to vector<32x160xbf16>
    %cst_41 = arith.constant dense<0.000000e+00> : vector<8x160xf32>
    %59 = tpu.matmul %46, %58, %cst_41 {dimension_numbers = #tpu.dot_dimension_numbers<[1], [0], [0], [1], [0, 0, 1, 1], [], []>} : vector<8x32xbf16>, vector<32x160xbf16>, vector<8x160xf32> -> vector<8x160xf32>
    %60 = arith.addf %56, %59 : vector<8x160xf32>
    %61 = arith.truncf %60 : vector<8x160xf32> to vector<8x160xbf16>
    %cst_42 = arith.constant 0.000000e+00 : bf16
    %62 = vector.broadcast %cst_42 : bf16 to vector<2x160xbf16>
    %63 = tpu.concatenate %62, %61, %62 in 0 : vector<2x160xbf16>, vector<8x160xbf16>, vector<2x160xbf16> -> vector<12x160xbf16>
    %64 = vector.extract_strided_slice %63 {offsets = [0, 0], sizes = [8, 160], strides = [1, 1]} : vector<12x160xbf16> to vector<8x160xbf16>
    %c0_43 = arith.constant 0 : index
    %c0_44 = arith.constant 0 : index
    %c0_45 = arith.constant 0 : index
    %65 = vector.load %arg7[%c0_43, %c0_44, %c0_45] : memref<5x160x48xbf16, #tpu.memory_space<vmem>>, vector<1x160x48xbf16>
    %66 = vector.shape_cast %65 : vector<1x160x48xbf16> to vector<160x48xbf16>
    %cst_46 = arith.constant dense<0.000000e+00> : vector<8x48xf32>
    %67 = tpu.matmul %64, %66, %cst_46 {dimension_numbers = #tpu.dot_dimension_numbers<[1], [0], [0], [1], [0, 0, 1, 1], [], []>} : vector<8x160xbf16>, vector<160x48xbf16>, vector<8x48xf32> -> vector<8x48xf32>
    %c0_47 = arith.constant 0 : index
    %c0_48 = arith.constant 0 : index
    %68 = vector.load %arg8[%c0_47, %c0_48] : memref<1x48xf32, #tpu.memory_space<vmem>>, vector<1x48xf32>
    %69 = vector.broadcast %68 : vector<1x48xf32> to vector<8x48xf32>
    %70 = arith.addf %67, %69 : vector<8x48xf32>
    %71 = vector.extract_strided_slice %63 {offsets = [1, 0], sizes = [8, 160], strides = [1, 1]} : vector<12x160xbf16> to vector<8x160xbf16>
    %c1_49 = arith.constant 1 : index
    %c0_50 = arith.constant 0 : index
    %c0_51 = arith.constant 0 : index
    %72 = vector.load %arg7[%c1_49, %c0_50, %c0_51] : memref<5x160x48xbf16, #tpu.memory_space<vmem>>, vector<1x160x48xbf16>
    %73 = vector.shape_cast %72 : vector<1x160x48xbf16> to vector<160x48xbf16>
    %cst_52 = arith.constant dense<0.000000e+00> : vector<8x48xf32>
    %74 = tpu.matmul %71, %73, %cst_52 {dimension_numbers = #tpu.dot_dimension_numbers<[1], [0], [0], [1], [0, 0, 1, 1], [], []>} : vector<8x160xbf16>, vector<160x48xbf16>, vector<8x48xf32> -> vector<8x48xf32>
    %75 = arith.addf %70, %74 : vector<8x48xf32>
    %76 = vector.extract_strided_slice %63 {offsets = [2, 0], sizes = [8, 160], strides = [1, 1]} : vector<12x160xbf16> to vector<8x160xbf16>
    %c2_53 = arith.constant 2 : index
    %c0_54 = arith.constant 0 : index
    %c0_55 = arith.constant 0 : index
    %77 = vector.load %arg7[%c2_53, %c0_54, %c0_55] : memref<5x160x48xbf16, #tpu.memory_space<vmem>>, vector<1x160x48xbf16>
    %78 = vector.shape_cast %77 : vector<1x160x48xbf16> to vector<160x48xbf16>
    %cst_56 = arith.constant dense<0.000000e+00> : vector<8x48xf32>
    %79 = tpu.matmul %76, %78, %cst_56 {dimension_numbers = #tpu.dot_dimension_numbers<[1], [0], [0], [1], [0, 0, 1, 1], [], []>} : vector<8x160xbf16>, vector<160x48xbf16>, vector<8x48xf32> -> vector<8x48xf32>
    %80 = arith.addf %75, %79 : vector<8x48xf32>
    %81 = vector.extract_strided_slice %63 {offsets = [3, 0], sizes = [8, 160], strides = [1, 1]} : vector<12x160xbf16> to vector<8x160xbf16>
    %c3_57 = arith.constant 3 : index
    %c0_58 = arith.constant 0 : index
    %c0_59 = arith.constant 0 : index
    %82 = vector.load %arg7[%c3_57, %c0_58, %c0_59] : memref<5x160x48xbf16, #tpu.memory_space<vmem>>, vector<1x160x48xbf16>
    %83 = vector.shape_cast %82 : vector<1x160x48xbf16> to vector<160x48xbf16>
    %cst_60 = arith.constant dense<0.000000e+00> : vector<8x48xf32>
    %84 = tpu.matmul %81, %83, %cst_60 {dimension_numbers = #tpu.dot_dimension_numbers<[1], [0], [0], [1], [0, 0, 1, 1], [], []>} : vector<8x160xbf16>, vector<160x48xbf16>, vector<8x48xf32> -> vector<8x48xf32>
    %85 = arith.addf %80, %84 : vector<8x48xf32>
    %86 = vector.extract_strided_slice %63 {offsets = [4, 0], sizes = [8, 160], strides = [1, 1]} : vector<12x160xbf16> to vector<8x160xbf16>
    %c4_61 = arith.constant 4 : index
    %c0_62 = arith.constant 0 : index
    %c0_63 = arith.constant 0 : index
    %87 = vector.load %arg7[%c4_61, %c0_62, %c0_63] : memref<5x160x48xbf16, #tpu.memory_space<vmem>>, vector<1x160x48xbf16>
    %88 = vector.shape_cast %87 : vector<1x160x48xbf16> to vector<160x48xbf16>
    %cst_64 = arith.constant dense<0.000000e+00> : vector<8x48xf32>
    %89 = tpu.matmul %86, %88, %cst_64 {dimension_numbers = #tpu.dot_dimension_numbers<[1], [0], [0], [1], [0, 0, 1, 1], [], []>} : vector<8x160xbf16>, vector<160x48xbf16>, vector<8x48xf32> -> vector<8x48xf32>
    %90 = arith.addf %85, %89 : vector<8x48xf32>
    %cst_65 = arith.constant 3.000000e+00 : f32
    %91 = vector.broadcast %cst_65 : f32 to vector<8x48xf32>
    %92 = arith.addf %90, %91 : vector<8x48xf32>
    %cst_66 = arith.constant 0.000000e+00 : f32
    %cst_67 = arith.constant 6.000000e+00 : f32
    %93 = vector.broadcast %cst_66 : f32 to vector<8x48xf32>
    %94 = arith.maximumf %93, %92 : vector<8x48xf32>
    %95 = vector.broadcast %cst_67 : f32 to vector<8x48xf32>
    %96 = arith.minimumf %95, %94 : vector<8x48xf32>
    %97 = arith.mulf %90, %96 : vector<8x48xf32>
    %cst_68 = arith.constant 0.166666672 : f32
    %98 = vector.broadcast %cst_68 : f32 to vector<8x48xf32>
    %99 = arith.mulf %97, %98 : vector<8x48xf32>
    %c0_69 = arith.constant 0 : index
    %c0_70 = arith.constant 0 : index
    %100 = vector.load %arg9[%c0_69, %c0_70] : memref<8x48xf32, #tpu.memory_space<vmem>>, vector<8x48xf32>
    tpu.vector_store %arg9[%c0_69, %c0_70], %99 {strides = array<i32>} : memref<8x48xf32, #tpu.memory_space<vmem>>, vector<8x48xf32>,
    return
  }
  func.func @transform_0(%arg0: i32) -> (i32, i32) {
    %c0_i32 = arith.constant 0 : i32
    %c0_i32_0 = arith.constant 0 : i32
    %c0_i32_1 = arith.constant 0 : i32
    return %c0_i32, %c0_i32_0 : i32, i32
  }
  func.func @transform_1(%arg0: i32) -> (i32, i32) {
    %c0_i32 = arith.constant 0 : i32
    %c0_i32_0 = arith.constant 0 : i32
    %c0_i32_1 = arith.constant 0 : i32
    return %c0_i32, %c0_i32_0 : i32, i32
  }
  func.func @transform_2(%arg0: i32) -> (i32, i32, i32) {
    %c0_i32 = arith.constant 0 : i32
    %c0_i32_0 = arith.constant 0 : i32
    %c0_i32_1 = arith.constant 0 : i32
    %c0_i32_2 = arith.constant 0 : i32
    return %c0_i32, %c0_i32_0, %c0_i32_1 : i32, i32, i32
  }
  func.func @transform_3(%arg0: i32) -> (i32, i32) {
    %c0_i32 = arith.constant 0 : i32
    %c0_i32_0 = arith.constant 0 : i32
    %c0_i32_1 = arith.constant 0 : i32
    return %c0_i32, %c0_i32_0 : i32, i32
  }
  func.func @transform_4(%arg0: i32) -> (i32, i32, i32) {
    %c0_i32 = arith.constant 0 : i32
    %c0_i32_0 = arith.constant 0 : i32
    %c0_i32_1 = arith.constant 0 : i32
    %c0_i32_2 = arith.constant 0 : i32
    return %c0_i32, %c0_i32_0, %c0_i32_1 : i32, i32, i32
  }
  func.func @transform_5(%arg0: i32) -> (i32, i32) {
    %c0_i32 = arith.constant 0 : i32
    %c0_i32_0 = arith.constant 0 : i32
    %c0_i32_1 = arith.constant 0 : i32
    return %c0_i32, %c0_i32_0 : i32, i32
  }
  func.func @transform_6(%arg0: i32) -> (i32, i32, i32) {
    %c0_i32 = arith.constant 0 : i32
    %c0_i32_0 = arith.constant 0 : i32
    %c0_i32_1 = arith.constant 0 : i32
    %c0_i32_2 = arith.constant 0 : i32
    return %c0_i32, %c0_i32_0, %c0_i32_1 : i32, i32, i32
  }
  func.func @transform_7(%arg0: i32) -> (i32, i32) {
    %c0_i32 = arith.constant 0 : i32
    %c0_i32_0 = arith.constant 0 : i32
    %c0_i32_1 = arith.constant 0 : i32
    return %c0_i32, %c0_i32_0 : i32, i32
  }
  func.func @transform_8(%arg0: i32) -> (i32, i32) {
    %c0_i32 = arith.constant 0 : i32
    %c0_i32_0 = arith.constant 0 : i32
    %c0_i32_1 = arith.constant 0 : i32
    return %c0_i32, %c0_i32_0 : i32, i32
  }
}

</mosaic_0001>

<llo_original>
// kernel: forward.1
$region0: #{forward.1}
  #allocation0 [shape = 'u32[]', space=smem, size = 0x4, offset = 0x4, fixed_abs, tag = 'smem constant byte address 0x4 - core index']
  #allocation1 [shape = 'u32[144,128]{1,0:T(1,128)}', space=vmem, size = 0x12000, scoped, tag = 'internal scratch']
  %s0 = inlined_call_operand.vmem [shape: bf16[32,192], index: 0, kind: input, shape index: {}]
  %s1 = inlined_call_operand.hbm [shape: bf16[112,32], index: 1, kind: input, shape index: {}]
  %s2 = inlined_call_operand.vmem [shape: bf16[7,192,32], index: 2, kind: input, shape index: {}]
  %s3 = inlined_call_operand.vmem [shape: f32[1,32], index: 3, kind: input, shape index: {}]
  %s4 = inlined_call_operand.hbm [shape: bf16[3,32,160], index: 4, kind: input, shape index: {}]
  %s5 = inlined_call_operand.vmem [shape: f32[1,160], index: 5, kind: input, shape index: {}]
  %s6 = inlined_call_operand.hbm [shape: bf16[5,160,48], index: 6, kind: input, shape index: {}]
  %s7 = inlined_call_operand.vmem [shape: f32[1,48], index: 7, kind: input, shape index: {}]
  %s8 = inlined_call_operand.vmem [shape: f32[8,48], index: 8, kind: output, shape index: {}]
  %s9 = sld [smem:[#allocation0]]
  $region54: #{forward.1} parent=0
    _
  %s11 = ssub.s32 1, %s9
  %s12 = scalar_select 0, %s11, %s9
  $region1: #{forward.1} parent=0
    #allocation2 [shape = 'u8[28672]{0}', space=vmem, size = 0x7000, scoped, tag = 'input window, operand 1, single buffered']
    #allocation3 [shape = 's32[1]{0}', space=sflag, size = 0x4, scoped, tag = 'scoped memory for forward.1']
    #allocation4 [shape = 'u8[49152]{0}', space=vmem, size = 0xc000, scoped, tag = 'input window, operand 4, single buffered']
    #allocation5 [shape = 's32[1]{0}', space=sflag, size = 0x4, scoped, tag = 'scoped memory for forward.1']
    #allocation6 [shape = 'u8[204800]{0}', space=vmem, size = 0x32000, scoped, tag = 'input window, operand 6, single buffered']
    %13 = vsyncpa [#allocation3], 0
    %14 = vsyncpa [#allocation5], 0
    // Predicated region
    $region2: #{forward.1} parent=1 // pred_check
      _
    $region3: #{forward.1} parent=1 // pred_check_branch
      %16 = sbr.rel (0) target = $region5
    $region4: #{forward.1} parent=1 // pred_region
      _
    $region5: #{forward.1} parent=1 // pred_fallthru
      _
    // Predicated region
    $region6: #{forward.1} parent=1 // pred_check
      _
    $region7: #{forward.1} parent=1 // pred_check_branch
      %18 = sbr.rel (0) target = $region9
    $region8: #{forward.1} parent=1 // pred_region
      %s20 = ssub.s32 896, 896
      %21 = vsyncadd [#allocation3], %s20
      %s22 = sshll.u32 [#allocation2], 4
      %s23 = int_to_ptr.vmem [resolvable:$true] %s22
      %28 = dma.hbm_to_vmem [thread:$0]  %s1, 896, %s23, [#allocation3], 64, 64, 4
    $region9: #{forward.1} parent=1 // pred_fallthru
      _
    // Predicated region
    $region10: #{forward.1} parent=1 // pred_check
      _
    $region11: #{forward.1} parent=1 // pred_check_branch
      %30 = sbr.rel (0) target = $region13
    $region12: #{forward.1} parent=1 // pred_region
      _
    $region13: #{forward.1} parent=1 // pred_fallthru
      _
    // Predicated region
    $region14: #{forward.1} parent=1 // pred_check
      _
    $region15: #{forward.1} parent=1 // pred_check_branch
      %32 = sbr.rel (0) target = $region17
    $region16: #{forward.1} parent=1 // pred_region
      _
    $region17: #{forward.1} parent=1 // pred_fallthru
      _
    // Predicated region
    $region18: #{forward.1} parent=1 // pred_check
      _
    $region19: #{forward.1} parent=1 // pred_check_branch
      %34 = sbr.rel (0) target = $region21
    $region20: #{forward.1} parent=1 // pred_region
      %s36 = ssub.s32 1536, 1536
      %37 = vsyncadd [#allocation5], %s36
      %s38 = sshll.u32 [#allocation4], 4
      %s39 = int_to_ptr.vmem [resolvable:$true] %s38
      %44 = dma.hbm_to_vmem [thread:$0]  %s4, 1536, %s39, [#allocation5], 128, 128, 8
    $region21: #{forward.1} parent=1 // pred_fallthru
      _
    // Predicated region
    $region22: #{forward.1} parent=1 // pred_check
      _
    $region23: #{forward.1} parent=1 // pred_check_branch
      %46 = sbr.rel (0) target = $region25
    $region24: #{forward.1} parent=1 // pred_region
      _
    $region25: #{forward.1} parent=1 // pred_fallthru
      _
    // Predicated region
    $region26: #{forward.1} parent=1 // pred_check
      _
    $region27: #{forward.1} parent=1 // pred_check_branch
      %48 = sbr.rel (0) target = $region29
    $region28: #{forward.1} parent=1 // pred_region
      %s50 = ssub.s32 6400, 6400
      %51 = vsyncadd [#allocation5], %s50
      %s52 = sshll.u32 [#allocation6], 4
      %s53 = int_to_ptr.vmem [resolvable:$true] %s52
      %58 = dma.hbm_to_vmem [thread:$0]  %s6, 6400, %s53, [#allocation5], 64, 64, 4
    $region29: #{forward.1} parent=1 // pred_fallthru
      _
    // Predicated region
    $region30: #{forward.1} parent=1 // pred_check
      _
    $region31: #{forward.1} parent=1 // pred_check_branch
      %60 = sbr.rel (0) target = $region33
    $region32: #{forward.1} parent=1 // pred_region
      _
    $region33: #{forward.1} parent=1 // pred_fallthru
      _
    // Predicated region
    $region34: #{forward.1} parent=1 // pred_check
      _
    $region35: #{forward.1} parent=1 // pred_check_branch
      %62 = sbr.rel (0) target = $region37
    $region36: #{forward.1} parent=1 // pred_region
      %63 = dma.done [#allocation3], 896
    $region37: #{forward.1} parent=1 // pred_fallthru
      _
    // Predicated region
    $region38: #{forward.1} parent=1 // pred_check
      _
    $region39: #{forward.1} parent=1 // pred_check_branch
      %65 = sbr.rel (0) target = $region41
    $region40: #{forward.1} parent=1 // pred_region
      %66 = dma.done [#allocation5], 1536
    $region41: #{forward.1} parent=1 // pred_fallthru
      _
    // Predicated region
    $region42: #{forward.1} parent=1 // pred_check
      _
    $region43: #{forward.1} parent=1 // pred_check_branch
      %68 = sbr.rel (0) target = $region45
    $region44: #{forward.1} parent=1 // pred_region
      %69 = dma.done [#allocation5], 6400
    $region45: #{forward.1} parent=1 // pred_fallthru
      _
    %v71 = vld [vmem:[#allocation2] sm:$0xf]
    %v72 = vld [vmem:[#allocation2 + $0x4] sm:$0xf]
    %v73 = vld [vmem:[#allocation2 + $0x8] sm:$0xf]
    %v74 = vld [vmem:[#allocation2 + $0xc] sm:$0xf]
    %v75 = vld [vmem:[#allocation2 + $0x10] sm:$0xf]
    %v76 = vld [vmem:[#allocation2 + $0x14] sm:$0xf]
    %v77 = vld [vmem:[#allocation2 + $0x18] sm:$0xf]
    %v78 = vld [vmem:[#allocation2 + $0x1c] sm:$0xf]
    %v79 = vld [vmem:[#allocation2 + $0x20] sm:$0xf]
    %v80 = vld [vmem:[#allocation2 + $0x24] sm:$0xf]
    %v81 = vld [vmem:[#allocation2 + $0x28] sm:$0xf]
    %v82 = vld [vmem:[#allocation2 + $0x2c] sm:$0xf]
    %v83 = vld [vmem:[#allocation2 + $0x30] sm:$0xf]
    %v84 = vld [vmem:[#allocation2 + $0x34] sm:$0xf]
    %v85 = vld [vmem:[%s0] sm:$0xff]
    %v86 = vld [vmem:[%s0 + $0x8] sm:$0xff]
    %v87 = vld [vmem:[%s0 + $0x10] sm:$0xff]
    %v88 = vld [vmem:[%s0 + $0x18] sm:$0xff]
    %v103 = vunpack.c.l.b16 %v71
    %v104 = vunpack.c.l.b16 %v72
    %v105 = vunpack.c.l.b16 %v73
    %v106 = vunpack.c.l.b16 %v74
    %v107 = vunpack.c.l.b16 %v75
    %v108 = vunpack.c.l.b16 %v76
    %v109 = vunpack.c.l.b16 %v77
    %v110 = vunpack.c.l.b16 %v78
    %v111 = vunpack.c.l.b16 %v79
    %v112 = vunpack.c.l.b16 %v80
    %v113 = vunpack.c.l.b16 %v81
    %v114 = vunpack.c.l.b16 %v82
    %v115 = vunpack.c.l.b16 %v83
    %v116 = vunpack.c.l.b16 %v84
    %v117 = vpack.c.b16 %v104, %v103
    %v118 = vpack.c.b16 %v106, %v105
    %v119 = vpack.c.b16 %v108, %v107
    %v120 = vpack.c.b16 %v110, %v109
    %v121 = vpack.c.b16 %v112, %v111
    %v122 = vpack.c.b16 %v114, %v113
    %v123 = vpack.c.b16 %v116, %v115
    %v128 = vunpack.c.l.b16 %v85
    %v129 = vunpack.c.h.b16 %v85
    %v130 = vunpack.c.l.b16 %v86
    %v131 = vunpack.c.h.b16 %v86
    %v132 = vunpack.c.l.b16 %v87
    %v133 = vunpack.c.h.b16 %v87
    %v134 = vunpack.c.l.b16 %v88
    %v135 = vunpack.c.h.b16 %v88
    %v136 = vpack.c.b16 %v130, %v128
    %v137 = vpack.c.b16 %v131, %v129
    %v138 = vpack.c.b16 %v134, %v132
    %v139 = vpack.c.b16 %v135, %v133
    %vm144 = vcmask 261120
    %v146 = vsel %vm144, %v117, 0
    %v149 = vsel %vm144, %v118, 0
    %v152 = vsel %vm144, %v119, 0
    %v155 = vsel %vm144, %v120, 0
    %v158 = vsel %vm144, %v121, 0
    %v161 = vsel %vm144, %v122, 0
    %v164 = vsel %vm144, %v123, 0
    %166 = vmatprep.subr.bf16.mxu0 0
    %167 = vmatpush1.bf16.msra.mxu0 0
    %168 = vmatprep.subr.bf16.mxu0 0
    %169 = vmatpush1.bf16.msra.mxu0 0
    %170 = vmatprep.subr.bf16.mxu0 0
    %171 = vmatpush1.bf16.msra.mxu0 0
    %172 = vmatprep.subr.bf16.mxu0 0
    %173 = vmatpush1.bf16.msra.mxu0 0
    %174 = vmatprep.subr.bf16.mxu0 0
    %175 = vmatpush1.bf16.msra.mxu0 0
    %176 = vmatprep.subr.bf16.mxu0 0
    %177 = vmatpush1.bf16.msra.mxu0 0
    %178 = vmatprep.subr.bf16.mxu0 %v139
    %179 = vmatpush1.bf16.msra.mxu0 %v138
    %180 = vmatprep.subr.bf16.mxu0 %v137
    %181 = vmatpush1.bf16.msra.mxu0 %v136
    %182 = vmatprep.subr.bf16.mxu0 0
    %183 = vmatpush2.bf16.msra.mxu0 0
    %184 = vmatprep.subr.bf16.mxu0 0
    %185 = vmatpush2.bf16.msra.mxu0 0
    %186 = vmatprep.subr.bf16.mxu0 0
    %187 = vmatpush2.bf16.msra.mxu0 0
    %188 = vmatprep.subr.bf16.mxu0 0
    %189 = vmatpush2.bf16.msra.mxu0 0
    %190 = vmatprep.subr.bf16.mxu0 0
    %191 = vmatpush2.bf16.msra.mxu0 0
    %192 = vmatprep.subr.bf16.mxu0 0
    %193 = vmatpush2.bf16.msra.mxu0 0
    %194 = vmatprep.subr.bf16.mxu0 0
    %195 = vmatpush2.bf16.msra.mxu0 0
    %196 = vmatprep.subr.bf16.mxu0 0
    %197 = vmatpush2.bf16.msra.mxu0 0
    %198 = vmatprep.mubr.bf16.mxu0 0
    %199 = vmatmul.mubr.bf16.gmra.mxu0 %v146
    %v200 = vpop.f32.mrf.mxu0
    %v201 = vadd.f32 0.0, %v200
    %v202 = vpop.f32.mrf.mxu0
    %v203 = vadd.f32 0.0, %v202
    %v204 = vpop.f32.mrf.mxu0
    %v205 = vadd.f32 0.0, %v204
    %v206 = vpop.f32.mrf.mxu0
    %v207 = vadd.f32 0.0, %v206
    %208 = vmatprep.mubr.bf16.mxu0 0
    %209 = vmatmul.mubr.bf16.gmra.mxu0 %v149
    %v210 = vpop.f32.mrf.mxu0
    %v211 = vadd.f32 0.0, %v210
    %v212 = vpop.f32.mrf.mxu0
    %v213 = vadd.f32 0.0, %v212
    %v214 = vpop.f32.mrf.mxu0
    %v215 = vadd.f32 0.0, %v214
    %v216 = vpop.f32.mrf.mxu0
    %v217 = vadd.f32 0.0, %v216
    %218 = vmatprep.mubr.bf16.mxu0 0
    %219 = vmatmul.mubr.bf16.gmra.mxu0 %v152
    %v220 = vpop.f32.mrf.mxu0
    %v221 = vadd.f32 0.0, %v220
    %v222 = vpop.f32.mrf.mxu0
    %v223 = vadd.f32 0.0, %v222
    %v224 = vpop.f32.mrf.mxu0
    %v225 = vadd.f32 0.0, %v224
    %v226 = vpop.f32.mrf.mxu0
    %v227 = vadd.f32 0.0, %v226
    %228 = vmatprep.mubr.bf16.mxu0 0
    %229 = vmatmul.mubr.bf16.gmra.mxu0 %v155
    %v230 = vpop.f32.mrf.mxu0
    %v231 = vadd.f32 0.0, %v230
    %v232 = vpop.f32.mrf.mxu0
    %v233 = vadd.f32 0.0, %v232
    %v234 = vpop.f32.mrf.mxu0
    %v235 = vadd.f32 0.0, %v234
    %v236 = vpop.f32.mrf.mxu0
    %v237 = vadd.f32 0.0, %v236
    %238 = vmatprep.mubr.bf16.mxu0 0
    %239 = vmatmul.mubr.bf16.gmra.mxu0 %v158
    %v240 = vpop.f32.mrf.mxu0
    %v241 = vadd.f32 0.0, %v240
    %v242 = vpop.f32.mrf.mxu0
    %v243 = vadd.f32 0.0, %v242
    %v244 = vpop.f32.mrf.mxu0
    %v245 = vadd.f32 0.0, %v244
    %v246 = vpop.f32.mrf.mxu0
    %v247 = vadd.f32 0.0, %v246
    %248 = vmatprep.mubr.bf16.mxu0 0
    %249 = vmatmul.mubr.bf16.gmra.mxu0 %v161
    %v250 = vpop.f32.mrf.mxu0
    %v251 = vadd.f32 0.0, %v250
    %v252 = vpop.f32.mrf.mxu0
    %v253 = vadd.f32 0.0, %v252
    %v254 = vpop.f32.mrf.mxu0
    %v255 = vadd.f32 0.0, %v254
    %v256 = vpop.f32.mrf.mxu0
    %v257 = vadd.f32 0.0, %v256
    %258 = vmatprep.mubr.bf16.mxu0 0
    %259 = vmatmul.mubr.bf16.gmra.mxu0 %v164
    %v260 = vpop.f32.mrf.mxu0
    %v261 = vadd.f32 0.0, %v260
    %v262 = vpop.f32.mrf.mxu0
    %v263 = vadd.f32 0.0, %v262
    %v264 = vpop.f32.mrf.mxu0
    %v265 = vadd.f32 0.0, %v264
    %v266 = vpop.f32.mrf.mxu0
    %v267 = vadd.f32 0.0, %v266
    %268 = vdwg.mxu0
    %v269 = vpack.c.bf16 %v205, %v201
    %v270 = vpack.c.bf16 %v207, %v203
    %v271 = vpack.c.bf16 %v215, %v211
    %v272 = vpack.c.bf16 %v217, %v213
    %v273 = vpack.c.bf16 %v225, %v221
    %v274 = vpack.c.bf16 %v227, %v223
    %v275 = vpack.c.bf16 %v235, %v231
    %v276 = vpack.c.bf16 %v237, %v233
    %v277 = vpack.c.bf16 %v245, %v241
    %v278 = vpack.c.bf16 %v247, %v243
    %v279 = vpack.c.bf16 %v255, %v251
    %v280 = vpack.c.bf16 %v257, %v253
    %v281 = vpack.c.bf16 %v265, %v261
    %v282 = vpack.c.bf16 %v267, %v263
    %v283 = vld [vmem:[%s2] sm:$0xf]
    %v284 = vld [vmem:[%s2 + $0x4] sm:$0xf]
    %v285 = vld [vmem:[%s2 + $0x8] sm:$0xf]
    %v286 = vld [vmem:[%s2 + $0xc] sm:$0xf]
    %v287 = vld [vmem:[%s2 + $0x10] sm:$0xf]
    %v288 = vld [vmem:[%s2 + $0x14] sm:$0xf]
    %v289 = vld [vmem:[%s2 + $0x18] sm:$0xf]
    %v290 = vld [vmem:[%s2 + $0x1c] sm:$0xf]
    %v291 = vld [vmem:[%s2 + $0x20] sm:$0xf]
    %v292 = vld [vmem:[%s2 + $0x24] sm:$0xf]
    %v293 = vld [vmem:[%s2 + $0x28] sm:$0xf]
    %v294 = vld [vmem:[%s2 + $0x2c] sm:$0xf]
    %v295 = vld [vmem:[%s2 + $0x30] sm:$0xf]
    %v296 = vld [vmem:[%s2 + $0x34] sm:$0xf]
    %v297 = vld [vmem:[%s2 + $0x38] sm:$0xf]
    %v298 = vld [vmem:[%s2 + $0x3c] sm:$0xf]
    %v299 = vld [vmem:[%s2 + $0x40] sm:$0xf]
    %v300 = vld [vmem:[%s2 + $0x44] sm:$0xf]
    %v301 = vld [vmem:[%s2 + $0x48] sm:$0xf]
    %v302 = vld [vmem:[%s2 + $0x4c] sm:$0xf]
    %v303 = vld [vmem:[%s2 + $0x50] sm:$0xf]
    %v304 = vld [vmem:[%s2 + $0x54] sm:$0xf]
    %v305 = vld [vmem:[%s2 + $0x58] sm:$0xf]
    %v306 = vld [vmem:[%s2 + $0x5c] sm:$0xf]
    %v307 = vld [vmem:[%s3] sm:$0x1]
    %v309 = vlaneseq
    %v310 = vshrl.u32 %v309, 7
    %v311 = vsub.s32 0, %v310
    %v312 = vrot.slane %v307, %v311
    %v338 = vunpack.c.l.b16 %v283
    %v339 = vunpack.c.l.b16 %v284
    %v340 = vunpack.c.l.b16 %v285
    %v341 = vunpack.c.l.b16 %v286
    %v342 = vunpack.c.l.b16 %v287
    %v343 = vunpack.c.l.b16 %v288
    %v344 = vunpack.c.l.b16 %v289
    %v345 = vunpack.c.l.b16 %v290
    %v346 = vunpack.c.l.b16 %v291
    %v347 = vunpack.c.l.b16 %v292
    %v348 = vunpack.c.l.b16 %v293
    %v349 = vunpack.c.l.b16 %v294
    %v350 = vunpack.c.l.b16 %v295
    %v351 = vunpack.c.l.b16 %v296
    %v352 = vunpack.c.l.b16 %v297
    %v353 = vunpack.c.l.b16 %v298
    %v354 = vunpack.c.l.b16 %v299
    %v355 = vunpack.c.l.b16 %v300
    %v356 = vunpack.c.l.b16 %v301
    %v357 = vunpack.c.l.b16 %v302
    %v358 = vunpack.c.l.b16 %v303
    %v359 = vunpack.c.l.b16 %v304
    %v360 = vunpack.c.l.b16 %v305
    %v361 = vunpack.c.l.b16 %v306
    %v362 = vpack.c.b16 %v339, %v338
    %v363 = vpack.c.b16 %v341, %v340
    %v364 = vpack.c.b16 %v343, %v342
    %v365 = vpack.c.b16 %v345, %v344
    %v366 = vpack.c.b16 %v347, %v346
    %v367 = vpack.c.b16 %v349, %v348
    %v368 = vpack.c.b16 %v351, %v350
    %v369 = vpack.c.b16 %v353, %v352
    %v370 = vpack.c.b16 %v355, %v354
    %v371 = vpack.c.b16 %v357, %v356
    %v372 = vpack.c.b16 %v359, %v358
    %v373 = vpack.c.b16 %v361, %v360
    %vm386 = vcmask 523264
    %v388 = vsel %vm386, %v270, 0
    %390 = vmatprep.subr.bf16.mxu0 0
    %391 = vmatpush1.bf16.msra.mxu0 %v369
    %392 = vmatprep.subr.bf16.mxu0 0
    %393 = vmatpush1.bf16.msra.mxu0 %v368
    %394 = vmatprep.subr.bf16.mxu0 0
    %395 = vmatpush1.bf16.msra.mxu0 %v367
    %396 = vmatprep.subr.bf16.mxu0 0
    %397 = vmatpush1.bf16.msra.mxu0 %v366
    %398 = vmatprep.subr.bf16.mxu0 0
    %399 = vmatpush1.bf16.msra.mxu0 %v365
    %400 = vmatprep.subr.bf16.mxu0 0
    %401 = vmatpush1.bf16.msra.mxu0 %v364
    %402 = vmatprep.subr.bf16.mxu0 0
    %403 = vmatpush1.bf16.msra.mxu0 %v363
    %404 = vmatprep.subr.bf16.mxu0 0
    %405 = vmatpush1.bf16.msra.mxu0 %v362
    %406 = vmatprep.subr.bf16.mxu0 0
    %407 = vmatpush2.bf16.msra.mxu0 0
    %408 = vmatprep.subr.bf16.mxu0 0
    %409 = vmatpush2.bf16.msra.mxu0 0
    %410 = vmatprep.subr.bf16.mxu0 0
    %411 = vmatpush2.bf16.msra.mxu0 0
    %412 = vmatprep.subr.bf16.mxu0 0
    %413 = vmatpush2.bf16.msra.mxu0 0
    %414 = vmatprep.subr.bf16.mxu0 0
    %415 = vmatpush2.bf16.msra.mxu0 %v373
    %416 = vmatprep.subr.bf16.mxu0 0
    %417 = vmatpush2.bf16.msra.mxu0 %v372
    %418 = vmatprep.subr.bf16.mxu0 0
    %419 = vmatpush2.bf16.msra.mxu0 %v371
    %420 = vmatprep.subr.bf16.mxu0 0
    %421 = vmatpush2.bf16.msra.mxu0 %v370
    %422 = vmatprep.mubr.bf16.mxu0 %v388
    %423 = vmatmul.mubr.bf16.gmra.mxu0 %v269
    %v424 = vpop.f32.mrf.mxu0
    %v425 = vadd.f32 %v312, %v424
    %v426 = vpop.f32.mrf.mxu0
    %v427 = vpop.f32.mrf.mxu0
    %v428 = vadd.f32 %v312, %v427
    %v429 = vpop.f32.mrf.mxu0
    %430 = vdwg.mxu0
    %s431 = scalar_lea.vmem %s2, 96
    %v432 = vld [vmem:[%s431] sm:$0xf]
    %v433 = vld [vmem:[%s431 + $0x4] sm:$0xf]
    %v434 = vld [vmem:[%s431 + $0x8] sm:$0xf]
    %v435 = vld [vmem:[%s431 + $0xc] sm:$0xf]
    %v436 = vld [vmem:[%s431 + $0x10] sm:$0xf]
    %v437 = vld [vmem:[%s431 + $0x14] sm:$0xf]
    %v438 = vld [vmem:[%s431 + $0x18] sm:$0xf]
    %v439 = vld [vmem:[%s431 + $0x1c] sm:$0xf]
    %v440 = vld [vmem:[%s431 + $0x20] sm:$0xf]
    %v441 = vld [vmem:[%s431 + $0x24] sm:$0xf]
    %v442 = vld [vmem:[%s431 + $0x28] sm:$0xf]
    %v443 = vld [vmem:[%s431 + $0x2c] sm:$0xf]
    %v444 = vld [vmem:[%s431 + $0x30] sm:$0xf]
    %v445 = vld [vmem:[%s431 + $0x34] sm:$0xf]
    %v446 = vld [vmem:[%s431 + $0x38] sm:$0xf]
    %v447 = vld [vmem:[%s431 + $0x3c] sm:$0xf]
    %v448 = vld [vmem:[%s431 + $0x40] sm:$0xf]
    %v449 = vld [vmem:[%s431 + $0x44] sm:$0xf]
    %v450 = vld [vmem:[%s431 + $0x48] sm:$0xf]
    %v451 = vld [vmem:[%s431 + $0x4c] sm:$0xf]
    %v452 = vld [vmem:[%s431 + $0x50] sm:$0xf]
    %v453 = vld [vmem:[%s431 + $0x54] sm:$0xf]
    %v454 = vld [vmem:[%s431 + $0x58] sm:$0xf]
    %v455 = vld [vmem:[%s431 + $0x5c] sm:$0xf]
    %v480 = vunpack.c.l.b16 %v432
    %v481 = vunpack.c.l.b16 %v433
    %v482 = vunpack.c.l.b16 %v434
    %v483 = vunpack.c.l.b16 %v435
    %v484 = vunpack.c.l.b16 %v436
    %v485 = vunpack.c.l.b16 %v437
    %v486 = vunpack.c.l.b16 %v438
    %v487 = vunpack.c.l.b16 %v439
    %v488 = vunpack.c.l.b16 %v440
    %v489 = vunpack.c.l.b16 %v441
    %v490 = vunpack.c.l.b16 %v442
    %v491 = vunpack.c.l.b16 %v443
    %v492 = vunpack.c.l.b16 %v444
    %v493 = vunpack.c.l.b16 %v445
    %v494 = vunpack.c.l.b16 %v446
    %v495 = vunpack.c.l.b16 %v447
    %v496 = vunpack.c.l.b16 %v448
    %v497 = vunpack.c.l.b16 %v449
    %v498 = vunpack.c.l.b16 %v450
    %v499 = vunpack.c.l.b16 %v451
    %v500 = vunpack.c.l.b16 %v452
    %v501 = vunpack.c.l.b16 %v453
    %v502 = vunpack.c.l.b16 %v454
    %v503 = vunpack.c.l.b16 %v455
    %v504 = vpack.c.b16 %v481, %v480
    %v505 = vpack.c.b16 %v483, %v482
    %v506 = vpack.c.b16 %v485, %v484
    %v507 = vpack.c.b16 %v487, %v486
    %v508 = vpack.c.b16 %v489, %v488
    %v509 = vpack.c.b16 %v491, %v490
    %v510 = vpack.c.b16 %v493, %v492
    %v511 = vpack.c.b16 %v495, %v494
    %v512 = vpack.c.b16 %v497, %v496
    %v513 = vpack.c.b16 %v499, %v498
    %v514 = vpack.c.b16 %v501, %v500
    %v515 = vpack.c.b16 %v503, %v502
    %v529 = vsel %vm386, %v272, 0
    %531 = vmatprep.subr.bf16.mxu0 0
    %532 = vmatpush1.bf16.msra.mxu0 %v511
    %533 = vmatprep.subr.bf16.mxu0 0
    %534 = vmatpush1.bf16.msra.mxu0 %v510
    %535 = vmatprep.subr.bf16.mxu0 0
    %536 = vmatpush1.bf16.msra.mxu0 %v509
    %537 = vmatprep.subr.bf16.mxu0 0
    %538 = vmatpush1.bf16.msra.mxu0 %v508
    %539 = vmatprep.subr.bf16.mxu0 0
    %540 = vmatpush1.bf16.msra.mxu0 %v507
    %541 = vmatprep.subr.bf16.mxu0 0
    %542 = vmatpush1.bf16.msra.mxu0 %v506
    %543 = vmatprep.subr.bf16.mxu0 0
    %544 = vmatpush1.bf16.msra.mxu0 %v505
    %545 = vmatprep.subr.bf16.mxu0 0
    %546 = vmatpush1.bf16.msra.mxu0 %v504
    %547 = vmatprep.subr.bf16.mxu0 0
    %548 = vmatpush2.bf16.msra.mxu0 0
    %549 = vmatprep.subr.bf16.mxu0 0
    %550 = vmatpush2.bf16.msra.mxu0 0
    %551 = vmatprep.subr.bf16.mxu0 0
    %552 = vmatpush2.bf16.msra.mxu0 0
    %553 = vmatprep.subr.bf16.mxu0 0
    %554 = vmatpush2.bf16.msra.mxu0 0
    %555 = vmatprep.subr.bf16.mxu0 0
    %556 = vmatpush2.bf16.msra.mxu0 %v515
    %557 = vmatprep.subr.bf16.mxu0 0
    %558 = vmatpush2.bf16.msra.mxu0 %v514
    %559 = vmatprep.subr.bf16.mxu0 0
    %560 = vmatpush2.bf16.msra.mxu0 %v513
    %561 = vmatprep.subr.bf16.mxu0 0
    %562 = vmatpush2.bf16.msra.mxu0 %v512
    %563 = vmatprep.mubr.bf16.mxu0 %v529
    %564 = vmatmul.mubr.bf16.gmra.mxu0 %v271
    %v565 = vpop.f32.mrf.mxu0
    %v566 = vadd.f32 0.0, %v565
    %v567 = vpop.f32.mrf.mxu0
    %v568 = vpop.f32.mrf.mxu0
    %v569 = vadd.f32 0.0, %v568
    %v570 = vpop.f32.mrf.mxu0
    %571 = vdwg.mxu0
    %v572 = vadd.f32 %v425, %v566
    %v573 = vadd.f32 %v428, %v569
    %s574 = scalar_lea.vmem %s2, 192
    %v575 = vld [vmem:[%s574] sm:$0xf]
    %v576 = vld [vmem:[%s574 + $0x4] sm:$0xf]
    %v577 = vld [vmem:[%s574 + $0x8] sm:$0xf]
    %v578 = vld [vmem:[%s574 + $0xc] sm:$0xf]
    %v579 = vld [vmem:[%s574 + $0x10] sm:$0xf]
    %v580 = vld [vmem:[%s574 + $0x14] sm:$0xf]
    %v581 = vld [vmem:[%s574 + $0x18] sm:$0xf]
    %v582 = vld [vmem:[%s574 + $0x1c] sm:$0xf]
    %v583 = vld [vmem:[%s574 + $0x20] sm:$0xf]
    %v584 = vld [vmem:[%s574 + $0x24] sm:$0xf]
    %v585 = vld [vmem:[%s574 + $0x28] sm:$0xf]
    %v586 = vld [vmem:[%s574 + $0x2c] sm:$0xf]
    %v587 = vld [vmem:[%s574 + $0x30] sm:$0xf]
    %v588 = vld [vmem:[%s574 + $0x34] sm:$0xf]
    %v589 = vld [vmem:[%s574 + $0x38] sm:$0xf]
    %v590 = vld [vmem:[%s574 + $0x3c] sm:$0xf]
    %v591 = vld [vmem:[%s574 + $0x40] sm:$0xf]
    %v592 = vld [vmem:[%s574 + $0x44] sm:$0xf]
    %v593 = vld [vmem:[%s574 + $0x48] sm:$0xf]
    %v594 = vld [vmem:[%s574 + $0x4c] sm:$0xf]
    %v595 = vld [vmem:[%s574 + $0x50] sm:$0xf]
    %v596 = vld [vmem:[%s574 + $0x54] sm:$0xf]
    %v597 = vld [vmem:[%s574 + $0x58] sm:$0xf]
    %v598 = vld [vmem:[%s574 + $0x5c] sm:$0xf]
    %v623 = vunpack.c.l.b16 %v575
    %v624 = vunpack.c.l.b16 %v576
    %v625 = vunpack.c.l.b16 %v577
    %v626 = vunpack.c.l.b16 %v578
    %v627 = vunpack.c.l.b16 %v579
    %v628 = vunpack.c.l.b16 %v580
    %v629 = vunpack.c.l.b16 %v581
    %v630 = vunpack.c.l.b16 %v582
    %v631 = vunpack.c.l.b16 %v583
    %v632 = vunpack.c.l.b16 %v584
    %v633 = vunpack.c.l.b16 %v585
    %v634 = vunpack.c.l.b16 %v586
    %v635 = vunpack.c.l.b16 %v587
    %v636 = vunpack.c.l.b16 %v588
    %v637 = vunpack.c.l.b16 %v589
    %v638 = vunpack.c.l.b16 %v590
    %v639 = vunpack.c.l.b16 %v591
    %v640 = vunpack.c.l.b16 %v592
    %v641 = vunpack.c.l.b16 %v593
    %v642 = vunpack.c.l.b16 %v594
    %v643 = vunpack.c.l.b16 %v595
    %v644 = vunpack.c.l.b16 %v596
    %v645 = vunpack.c.l.b16 %v597
    %v646 = vunpack.c.l.b16 %v598
    %v647 = vpack.c.b16 %v624, %v623
    %v648 = vpack.c.b16 %v626, %v625
    %v649 = vpack.c.b16 %v628, %v627
    %v650 = vpack.c.b16 %v630, %v629
    %v651 = vpack.c.b16 %v632, %v631
    %v652 = vpack.c.b16 %v634, %v633
    %v653 = vpack.c.b16 %v636, %v635
    %v654 = vpack.c.b16 %v638, %v637
    %v655 = vpack.c.b16 %v640, %v639
    %v656 = vpack.c.b16 %v642, %v641
    %v657 = vpack.c.b16 %v644, %v643
    %v658 = vpack.c.b16 %v646, %v645
    %v672 = vsel %vm386, %v274, 0
    %674 = vmatprep.subr.bf16.mxu0 0
    %675 = vmatpush1.bf16.msra.mxu0 %v654
    %676 = vmatprep.subr.bf16.mxu0 0
    %677 = vmatpush1.bf16.msra.mxu0 %v653
    %678 = vmatprep.subr.bf16.mxu0 0
    %679 = vmatpush1.bf16.msra.mxu0 %v652
    %680 = vmatprep.subr.bf16.mxu0 0
    %681 = vmatpush1.bf16.msra.mxu0 %v651
    %682 = vmatprep.subr.bf16.mxu0 0
    %683 = vmatpush1.bf16.msra.mxu0 %v650
    %684 = vmatprep.subr.bf16.mxu0 0
    %685 = vmatpush1.bf16.msra.mxu0 %v649
    %686 = vmatprep.subr.bf16.mxu0 0
    %687 = vmatpush1.bf16.msra.mxu0 %v648
    %688 = vmatprep.subr.bf16.mxu0 0
    %689 = vmatpush1.bf16.msra.mxu0 %v647
    %690 = vmatprep.subr.bf16.mxu0 0
    %691 = vmatpush2.bf16.msra.mxu0 0
    %692 = vmatprep.subr.bf16.mxu0 0
    %693 = vmatpush2.bf16.msra.mxu0 0
    %694 = vmatprep.subr.bf16.mxu0 0
    %695 = vmatpush2.bf16.msra.mxu0 0
    %696 = vmatprep.subr.bf16.mxu0 0
    %697 = vmatpush2.bf16.msra.mxu0 0
    %698 = vmatprep.subr.bf16.mxu0 0
    %699 = vmatpush2.bf16.msra.mxu0 %v658
    %700 = vmatprep.subr.bf16.mxu0 0
    %701 = vmatpush2.bf16.msra.mxu0 %v657
    %702 = vmatprep.subr.bf16.mxu0 0
    %703 = vmatpush2.bf16.msra.mxu0 %v656
    %704 = vmatprep.subr.bf16.mxu0 0
    %705 = vmatpush2.bf16.msra.mxu0 %v655
    %706 = vmatprep.mubr.bf16.mxu0 %v672
    %707 = vmatmul.mubr.bf16.gmra.mxu0 %v273
    %v708 = vpop.f32.mrf.mxu0
    %v709 = vadd.f32 0.0, %v708
    %v710 = vpop.f32.mrf.mxu0
    %v711 = vpop.f32.mrf.mxu0
    %v712 = vadd.f32 0.0, %v711
    %v713 = vpop.f32.mrf.mxu0
    %714 = vdwg.mxu0
    %v715 = vadd.f32 %v572, %v709
    %v716 = vadd.f32 %v573, %v712
    %s717 = scalar_lea.vmem %s2, 288
    %v718 = vld [vmem:[%s717] sm:$0xf]
    %v719 = vld [vmem:[%s717 + $0x4] sm:$0xf]
    %v720 = vld [vmem:[%s717 + $0x8] sm:$0xf]
    %v721 = vld [vmem:[%s717 + $0xc] sm:$0xf]
    %v722 = vld [vmem:[%s717 + $0x10] sm:$0xf]
    %v723 = vld [vmem:[%s717 + $0x14] sm:$0xf]
    %v724 = vld [vmem:[%s717 + $0x18] sm:$0xf]
    %v725 = vld [vmem:[%s717 + $0x1c] sm:$0xf]
    %v726 = vld [vmem:[%s717 + $0x20] sm:$0xf]
    %v727 = vld [vmem:[%s717 + $0x24] sm:$0xf]
    %v728 = vld [vmem:[%s717 + $0x28] sm:$0xf]
    %v729 = vld [vmem:[%s717 + $0x2c] sm:$0xf]
    %v730 = vld [vmem:[%s717 + $0x30] sm:$0xf]
    %v731 = vld [vmem:[%s717 + $0x34] sm:$0xf]
    %v732 = vld [vmem:[%s717 + $0x38] sm:$0xf]
    %v733 = vld [vmem:[%s717 + $0x3c] sm:$0xf]
    %v734 = vld [vmem:[%s717 + $0x40] sm:$0xf]
    %v735 = vld [vmem:[%s717 + $0x44] sm:$0xf]
    %v736 = vld [vmem:[%s717 + $0x48] sm:$0xf]
    %v737 = vld [vmem:[%s717 + $0x4c] sm:$0xf]
    %v738 = vld [vmem:[%s717 + $0x50] sm:$0xf]
    %v739 = vld [vmem:[%s717 + $0x54] sm:$0xf]
    %v740 = vld [vmem:[%s717 + $0x58] sm:$0xf]
    %v741 = vld [vmem:[%s717 + $0x5c] sm:$0xf]
    %v766 = vunpack.c.l.b16 %v718
    %v767 = vunpack.c.l.b16 %v719
    %v768 = vunpack.c.l.b16 %v720
    %v769 = vunpack.c.l.b16 %v721
    %v770 = vunpack.c.l.b16 %v722
    %v771 = vunpack.c.l.b16 %v723
    %v772 = vunpack.c.l.b16 %v724
    %v773 = vunpack.c.l.b16 %v725
    %v774 = vunpack.c.l.b16 %v726
    %v775 = vunpack.c.l.b16 %v727
    %v776 = vunpack.c.l.b16 %v728
    %v777 = vunpack.c.l.b16 %v729
    %v778 = vunpack.c.l.b16 %v730
    %v779 = vunpack.c.l.b16 %v731
    %v780 = vunpack.c.l.b16 %v732
    %v781 = vunpack.c.l.b16 %v733
    %v782 = vunpack.c.l.b16 %v734
    %v783 = vunpack.c.l.b16 %v735
    %v784 = vunpack.c.l.b16 %v736
    %v785 = vunpack.c.l.b16 %v737
    %v786 = vunpack.c.l.b16 %v738
    %v787 = vunpack.c.l.b16 %v739
    %v788 = vunpack.c.l.b16 %v740
    %v789 = vunpack.c.l.b16 %v741
    %v790 = vpack.c.b16 %v767, %v766
    %v791 = vpack.c.b16 %v769, %v768
    %v792 = vpack.c.b16 %v771, %v770
    %v793 = vpack.c.b16 %v773, %v772
    %v794 = vpack.c.b16 %v775, %v774
    %v795 = vpack.c.b16 %v777, %v776
    %v796 = vpack.c.b16 %v779, %v778
    %v797 = vpack.c.b16 %v781, %v780
    %v798 = vpack.c.b16 %v783, %v782
    %v799 = vpack.c.b16 %v785, %v784
    %v800 = vpack.c.b16 %v787, %v786
    %v801 = vpack.c.b16 %v789, %v788
    %v815 = vsel %vm386, %v276, 0
    %817 = vmatprep.subr.bf16.mxu0 0
    %818 = vmatpush1.bf16.msra.mxu0 %v797
    %819 = vmatprep.subr.bf16.mxu0 0
    %820 = vmatpush1.bf16.msra.mxu0 %v796
    %821 = vmatprep.subr.bf16.mxu0 0
    %822 = vmatpush1.bf16.msra.mxu0 %v795
    %823 = vmatprep.subr.bf16.mxu0 0
    %824 = vmatpush1.bf16.msra.mxu0 %v794
    %825 = vmatprep.subr.bf16.mxu0 0
    %826 = vmatpush1.bf16.msra.mxu0 %v793
    %827 = vmatprep.subr.bf16.mxu0 0
    %828 = vmatpush1.bf16.msra.mxu0 %v792
    %829 = vmatprep.subr.bf16.mxu0 0
    %830 = vmatpush1.bf16.msra.mxu0 %v791
    %831 = vmatprep.subr.bf16.mxu0 0
    %832 = vmatpush1.bf16.msra.mxu0 %v790
    %833 = vmatprep.subr.bf16.mxu0 0
    %834 = vmatpush2.bf16.msra.mxu0 0
    %835 = vmatprep.subr.bf16.mxu0 0
    %836 = vmatpush2.bf16.msra.mxu0 0
    %837 = vmatprep.subr.bf16.mxu0 0
    %838 = vmatpush2.bf16.msra.mxu0 0
    %839 = vmatprep.subr.bf16.mxu0 0
    %840 = vmatpush2.bf16.msra.mxu0 0
    %841 = vmatprep.subr.bf16.mxu0 0
    %842 = vmatpush2.bf16.msra.mxu0 %v801
    %843 = vmatprep.subr.bf16.mxu0 0
    %844 = vmatpush2.bf16.msra.mxu0 %v800
    %845 = vmatprep.subr.bf16.mxu0 0
    %846 = vmatpush2.bf16.msra.mxu0 %v799
    %847 = vmatprep.subr.bf16.mxu0 0
    %848 = vmatpush2.bf16.msra.mxu0 %v798
    %849 = vmatprep.mubr.bf16.mxu0 %v815
    %850 = vmatmul.mubr.bf16.gmra.mxu0 %v275
    %v851 = vpop.f32.mrf.mxu0
    %v852 = vadd.f32 0.0, %v851
    %v853 = vpop.f32.mrf.mxu0
    %v854 = vpop.f32.mrf.mxu0
    %v855 = vadd.f32 0.0, %v854
    %v856 = vpop.f32.mrf.mxu0
    %857 = vdwg.mxu0
    %v858 = vadd.f32 %v715, %v852
    %v859 = vadd.f32 %v716, %v855
    %s860 = scalar_lea.vmem %s2, 384
    %v861 = vld [vmem:[%s860] sm:$0xf]
    %v862 = vld [vmem:[%s860 + $0x4] sm:$0xf]
    %v863 = vld [vmem:[%s860 + $0x8] sm:$0xf]
    %v864 = vld [vmem:[%s860 + $0xc] sm:$0xf]
    %v865 = vld [vmem:[%s860 + $0x10] sm:$0xf]
    %v866 = vld [vmem:[%s860 + $0x14] sm:$0xf]
    %v867 = vld [vmem:[%s860 + $0x18] sm:$0xf]
    %v868 = vld [vmem:[%s860 + $0x1c] sm:$0xf]
    %v869 = vld [vmem:[%s860 + $0x20] sm:$0xf]
    %v870 = vld [vmem:[%s860 + $0x24] sm:$0xf]
    %v871 = vld [vmem:[%s860 + $0x28] sm:$0xf]
    %v872 = vld [vmem:[%s860 + $0x2c] sm:$0xf]
    %v873 = vld [vmem:[%s860 + $0x30] sm:$0xf]
    %v874 = vld [vmem:[%s860 + $0x34] sm:$0xf]
    %v875 = vld [vmem:[%s860 + $0x38] sm:$0xf]
    %v876 = vld [vmem:[%s860 + $0x3c] sm:$0xf]
    %v877 = vld [vmem:[%s860 + $0x40] sm:$0xf]
    %v878 = vld [vmem:[%s860 + $0x44] sm:$0xf]
    %v879 = vld [vmem:[%s860 + $0x48] sm:$0xf]
    %v880 = vld [vmem:[%s860 + $0x4c] sm:$0xf]
    %v881 = vld [vmem:[%s860 + $0x50] sm:$0xf]
    %v882 = vld [vmem:[%s860 + $0x54] sm:$0xf]
    %v883 = vld [vmem:[%s860 + $0x58] sm:$0xf]
    %v884 = vld [vmem:[%s860 + $0x5c] sm:$0xf]
    %v909 = vunpack.c.l.b16 %v861
    %v910 = vunpack.c.l.b16 %v862
    %v911 = vunpack.c.l.b16 %v863
    %v912 = vunpack.c.l.b16 %v864
    %v913 = vunpack.c.l.b16 %v865
    %v914 = vunpack.c.l.b16 %v866
    %v915 = vunpack.c.l.b16 %v867
    %v916 = vunpack.c.l.b16 %v868
    %v917 = vunpack.c.l.b16 %v869
    %v918 = vunpack.c.l.b16 %v870
    %v919 = vunpack.c.l.b16 %v871
    %v920 = vunpack.c.l.b16 %v872
    %v921 = vunpack.c.l.b16 %v873
    %v922 = vunpack.c.l.b16 %v874
    %v923 = vunpack.c.l.b16 %v875
    %v924 = vunpack.c.l.b16 %v876
    %v925 = vunpack.c.l.b16 %v877
    %v926 = vunpack.c.l.b16 %v878
    %v927 = vunpack.c.l.b16 %v879
    %v928 = vunpack.c.l.b16 %v880
    %v929 = vunpack.c.l.b16 %v881
    %v930 = vunpack.c.l.b16 %v882
    %v931 = vunpack.c.l.b16 %v883
    %v932 = vunpack.c.l.b16 %v884
    %v933 = vpack.c.b16 %v910, %v909
    %v934 = vpack.c.b16 %v912, %v911
    %v935 = vpack.c.b16 %v914, %v913
    %v936 = vpack.c.b16 %v916, %v915
    %v937 = vpack.c.b16 %v918, %v917
    %v938 = vpack.c.b16 %v920, %v919
    %v939 = vpack.c.b16 %v922, %v921
    %v940 = vpack.c.b16 %v924, %v923
    %v941 = vpack.c.b16 %v926, %v925
    %v942 = vpack.c.b16 %v928, %v927
    %v943 = vpack.c.b16 %v930, %v929
    %v944 = vpack.c.b16 %v932, %v931
    %v958 = vsel %vm386, %v278, 0
    %960 = vmatprep.subr.bf16.mxu0 0
    %961 = vmatpush1.bf16.msra.mxu0 %v940
    %962 = vmatprep.subr.bf16.mxu0 0
    %963 = vmatpush1.bf16.msra.mxu0 %v939
    %964 = vmatprep.subr.bf16.mxu0 0
    %965 = vmatpush1.bf16.msra.mxu0 %v938
    %966 = vmatprep.subr.bf16.mxu0 0
    %967 = vmatpush1.bf16.msra.mxu0 %v937
    %968 = vmatprep.subr.bf16.mxu0 0
    %969 = vmatpush1.bf16.msra.mxu0 %v936
    %970 = vmatprep.subr.bf16.mxu0 0
    %971 = vmatpush1.bf16.msra.mxu0 %v935
    %972 = vmatprep.subr.bf16.mxu0 0
    %973 = vmatpush1.bf16.msra.mxu0 %v934
    %974 = vmatprep.subr.bf16.mxu0 0
    %975 = vmatpush1.bf16.msra.mxu0 %v933
    %976 = vmatprep.subr.bf16.mxu0 0
    %977 = vmatpush2.bf16.msra.mxu0 0
    %978 = vmatprep.subr.bf16.mxu0 0
    %979 = vmatpush2.bf16.msra.mxu0 0
    %980 = vmatprep.subr.bf16.mxu0 0
    %981 = vmatpush2.bf16.msra.mxu0 0
    %982 = vmatprep.subr.bf16.mxu0 0
    %983 = vmatpush2.bf16.msra.mxu0 0
    %984 = vmatprep.subr.bf16.mxu0 0
    %985 = vmatpush2.bf16.msra.mxu0 %v944
    %986 = vmatprep.subr.bf16.mxu0 0
    %987 = vmatpush2.bf16.msra.mxu0 %v943
    %988 = vmatprep.subr.bf16.mxu0 0
    %989 = vmatpush2.bf16.msra.mxu0 %v942
    %990 = vmatprep.subr.bf16.mxu0 0
    %991 = vmatpush2.bf16.msra.mxu0 %v941
    %992 = vmatprep.mubr.bf16.mxu0 %v958
    %993 = vmatmul.mubr.bf16.gmra.mxu0 %v277
    %v994 = vpop.f32.mrf.mxu0
    %v995 = vadd.f32 0.0, %v994
    %v996 = vpop.f32.mrf.mxu0
    %v997 = vpop.f32.mrf.mxu0
    %v998 = vadd.f32 0.0, %v997
    %v999 = vpop.f32.mrf.mxu0
    %1000 = vdwg.mxu0
    %v1001 = vadd.f32 %v858, %v995
    %v1002 = vadd.f32 %v859, %v998
    %s1003 = scalar_lea.vmem %s2, 480
    %v1004 = vld [vmem:[%s1003] sm:$0xf]
    %v1005 = vld [vmem:[%s1003 + $0x4] sm:$0xf]
    %v1006 = vld [vmem:[%s1003 + $0x8] sm:$0xf]
    %v1007 = vld [vmem:[%s1003 + $0xc] sm:$0xf]
    %v1008 = vld [vmem:[%s1003 + $0x10] sm:$0xf]
    %v1009 = vld [vmem:[%s1003 + $0x14] sm:$0xf]
    %v1010 = vld [vmem:[%s1003 + $0x18] sm:$0xf]
    %v1011 = vld [vmem:[%s1003 + $0x1c] sm:$0xf]
    %v1012 = vld [vmem:[%s1003 + $0x20] sm:$0xf]
    %v1013 = vld [vmem:[%s1003 + $0x24] sm:$0xf]
    %v1014 = vld [vmem:[%s1003 + $0x28] sm:$0xf]
    %v1015 = vld [vmem:[%s1003 + $0x2c] sm:$0xf]
    %v1016 = vld [vmem:[%s1003 + $0x30] sm:$0xf]
    %v1017 = vld [vmem:[%s1003 + $0x34] sm:$0xf]
    %v1018 = vld [vmem:[%s1003 + $0x38] sm:$0xf]
    %v1019 = vld [vmem:[%s1003 + $0x3c] sm:$0xf]
    %v1020 = vld [vmem:[%s1003 + $0x40] sm:$0xf]
    %v1021 = vld [vmem:[%s1003 + $0x44] sm:$0xf]
    %v1022 = vld [vmem:[%s1003 + $0x48] sm:$0xf]
    %v1023 = vld [vmem:[%s1003 + $0x4c] sm:$0xf]
    %v1024 = vld [vmem:[%s1003 + $0x50] sm:$0xf]
    %v1025 = vld [vmem:[%s1003 + $0x54] sm:$0xf]
    %v1026 = vld [vmem:[%s1003 + $0x58] sm:$0xf]
    %v1027 = vld [vmem:[%s1003 + $0x5c] sm:$0xf]
    %v1052 = vunpack.c.l.b16 %v1004
    %v1053 = vunpack.c.l.b16 %v1005
    %v1054 = vunpack.c.l.b16 %v1006
    %v1055 = vunpack.c.l.b16 %v1007
    %v1056 = vunpack.c.l.b16 %v1008
    %v1057 = vunpack.c.l.b16 %v1009
    %v1058 = vunpack.c.l.b16 %v1010
    %v1059 = vunpack.c.l.b16 %v1011
    %v1060 = vunpack.c.l.b16 %v1012
    %v1061 = vunpack.c.l.b16 %v1013
    %v1062 = vunpack.c.l.b16 %v1014
    %v1063 = vunpack.c.l.b16 %v1015
    %v1064 = vunpack.c.l.b16 %v1016
    %v1065 = vunpack.c.l.b16 %v1017
    %v1066 = vunpack.c.l.b16 %v1018
    %v1067 = vunpack.c.l.b16 %v1019
    %v1068 = vunpack.c.l.b16 %v1020
    %v1069 = vunpack.c.l.b16 %v1021
    %v1070 = vunpack.c.l.b16 %v1022
    %v1071 = vunpack.c.l.b16 %v1023
    %v1072 = vunpack.c.l.b16 %v1024
    %v1073 = vunpack.c.l.b16 %v1025
    %v1074 = vunpack.c.l.b16 %v1026
    %v1075 = vunpack.c.l.b16 %v1027
    %v1076 = vpack.c.b16 %v1053, %v1052
    %v1077 = vpack.c.b16 %v1055, %v1054
    %v1078 = vpack.c.b16 %v1057, %v1056
    %v1079 = vpack.c.b16 %v1059, %v1058
    %v1080 = vpack.c.b16 %v1061, %v1060
    %v1081 = vpack.c.b16 %v1063, %v1062
    %v1082 = vpack.c.b16 %v1065, %v1064
    %v1083 = vpack.c.b16 %v1067, %v1066
    %v1084 = vpack.c.b16 %v1069, %v1068
    %v1085 = vpack.c.b16 %v1071, %v1070
    %v1086 = vpack.c.b16 %v1073, %v1072
    %v1087 = vpack.c.b16 %v1075, %v1074
    %v1101 = vsel %vm386, %v280, 0
    %1103 = vmatprep.subr.bf16.mxu0 0
    %1104 = vmatpush1.bf16.msra.mxu0 %v1083
    %1105 = vmatprep.subr.bf16.mxu0 0
    %1106 = vmatpush1.bf16.msra.mxu0 %v1082
    %1107 = vmatprep.subr.bf16.mxu0 0
    %1108 = vmatpush1.bf16.msra.mxu0 %v1081
    %1109 = vmatprep.subr.bf16.mxu0 0
    %1110 = vmatpush1.bf16.msra.mxu0 %v1080
    %1111 = vmatprep.subr.bf16.mxu0 0
    %1112 = vmatpush1.bf16.msra.mxu0 %v1079
    %1113 = vmatprep.subr.bf16.mxu0 0
    %1114 = vmatpush1.bf16.msra.mxu0 %v1078
    %1115 = vmatprep.subr.bf16.mxu0 0
    %1116 = vmatpush1.bf16.msra.mxu0 %v1077
    %1117 = vmatprep.subr.bf16.mxu0 0
    %1118 = vmatpush1.bf16.msra.mxu0 %v1076
    %1119 = vmatprep.subr.bf16.mxu0 0
    %1120 = vmatpush2.bf16.msra.mxu0 0
    %1121 = vmatprep.subr.bf16.mxu0 0
    %1122 = vmatpush2.bf16.msra.mxu0 0
    %1123 = vmatprep.subr.bf16.mxu0 0
    %1124 = vmatpush2.bf16.msra.mxu0 0
    %1125 = vmatprep.subr.bf16.mxu0 0
    %1126 = vmatpush2.bf16.msra.mxu0 0
    %1127 = vmatprep.subr.bf16.mxu0 0
    %1128 = vmatpush2.bf16.msra.mxu0 %v1087
    %1129 = vmatprep.subr.bf16.mxu0 0
    %1130 = vmatpush2.bf16.msra.mxu0 %v1086
    %1131 = vmatprep.subr.bf16.mxu0 0
    %1132 = vmatpush2.bf16.msra.mxu0 %v1085
    %1133 = vmatprep.subr.bf16.mxu0 0
    %1134 = vmatpush2.bf16.msra.mxu0 %v1084
    %1135 = vmatprep.mubr.bf16.mxu0 %v1101
    %1136 = vmatmul.mubr.bf16.gmra.mxu0 %v279
    %v1137 = vpop.f32.mrf.mxu0
    %v1138 = vadd.f32 0.0, %v1137
    %v1139 = vpop.f32.mrf.mxu0
    %v1140 = vpop.f32.mrf.mxu0
    %v1141 = vadd.f32 0.0, %v1140
    %v1142 = vpop.f32.mrf.mxu0
    %1143 = vdwg.mxu0
    %v1144 = vadd.f32 %v1001, %v1138
    %v1145 = vadd.f32 %v1002, %v1141
    %s1146 = scalar_lea.vmem %s2, 576
    %v1147 = vld [vmem:[%s1146] sm:$0xf]
    %v1148 = vld [vmem:[%s1146 + $0x4] sm:$0xf]
    %v1149 = vld [vmem:[%s1146 + $0x8] sm:$0xf]
    %v1150 = vld [vmem:[%s1146 + $0xc] sm:$0xf]
    %v1151 = vld [vmem:[%s1146 + $0x10] sm:$0xf]
    %v1152 = vld [vmem:[%s1146 + $0x14] sm:$0xf]
    %v1153 = vld [vmem:[%s1146 + $0x18] sm:$0xf]
    %v1154 = vld [vmem:[%s1146 + $0x1c] sm:$0xf]
    %v1155 = vld [vmem:[%s1146 + $0x20] sm:$0xf]
    %v1156 = vld [vmem:[%s1146 + $0x24] sm:$0xf]
    %v1157 = vld [vmem:[%s1146 + $0x28] sm:$0xf]
    %v1158 = vld [vmem:[%s1146 + $0x2c] sm:$0xf]
    %v1159 = vld [vmem:[%s1146 + $0x30] sm:$0xf]
    %v1160 = vld [vmem:[%s1146 + $0x34] sm:$0xf]
    %v1161 = vld [vmem:[%s1146 + $0x38] sm:$0xf]
    %v1162 = vld [vmem:[%s1146 + $0x3c] sm:$0xf]
    %v1163 = vld [vmem:[%s1146 + $0x40] sm:$0xf]
    %v1164 = vld [vmem:[%s1146 + $0x44] sm:$0xf]
    %v1165 = vld [vmem:[%s1146 + $0x48] sm:$0xf]
    %v1166 = vld [vmem:[%s1146 + $0x4c] sm:$0xf]
    %v1167 = vld [vmem:[%s1146 + $0x50] sm:$0xf]
    %v1168 = vld [vmem:[%s1146 + $0x54] sm:$0xf]
    %v1169 = vld [vmem:[%s1146 + $0x58] sm:$0xf]
    %v1170 = vld [vmem:[%s1146 + $0x5c] sm:$0xf]
    %v1195 = vunpack.c.l.b16 %v1147
    %v1196 = vunpack.c.l.b16 %v1148
    %v1197 = vunpack.c.l.b16 %v1149
    %v1198 = vunpack.c.l.b16 %v1150
    %v1199 = vunpack.c.l.b16 %v1151
    %v1200 = vunpack.c.l.b16 %v1152
    %v1201 = vunpack.c.l.b16 %v1153
    %v1202 = vunpack.c.l.b16 %v1154
    %v1203 = vunpack.c.l.b16 %v1155
    %v1204 = vunpack.c.l.b16 %v1156
    %v1205 = vunpack.c.l.b16 %v1157
    %v1206 = vunpack.c.l.b16 %v1158
    %v1207 = vunpack.c.l.b16 %v1159
    %v1208 = vunpack.c.l.b16 %v1160
    %v1209 = vunpack.c.l.b16 %v1161
    %v1210 = vunpack.c.l.b16 %v1162
    %v1211 = vunpack.c.l.b16 %v1163
    %v1212 = vunpack.c.l.b16 %v1164
    %v1213 = vunpack.c.l.b16 %v1165
    %v1214 = vunpack.c.l.b16 %v1166
    %v1215 = vunpack.c.l.b16 %v1167
    %v1216 = vunpack.c.l.b16 %v1168
    %v1217 = vunpack.c.l.b16 %v1169
    %v1218 = vunpack.c.l.b16 %v1170
    %v1219 = vpack.c.b16 %v1196, %v1195
    %v1220 = vpack.c.b16 %v1198, %v1197
    %v1221 = vpack.c.b16 %v1200, %v1199
    %v1222 = vpack.c.b16 %v1202, %v1201
    %v1223 = vpack.c.b16 %v1204, %v1203
    %v1224 = vpack.c.b16 %v1206, %v1205
    %v1225 = vpack.c.b16 %v1208, %v1207
    %v1226 = vpack.c.b16 %v1210, %v1209
    %v1227 = vpack.c.b16 %v1212, %v1211
    %v1228 = vpack.c.b16 %v1214, %v1213
    %v1229 = vpack.c.b16 %v1216, %v1215
    %v1230 = vpack.c.b16 %v1218, %v1217
    %v1244 = vsel %vm386, %v282, 0
    %1246 = vmatprep.subr.bf16.mxu0 0
    %1247 = vmatpush1.bf16.msra.mxu0 %v1226
    %1248 = vmatprep.subr.bf16.mxu0 0
    %1249 = vmatpush1.bf16.msra.mxu0 %v1225
    %1250 = vmatprep.subr.bf16.mxu0 0
    %1251 = vmatpush1.bf16.msra.mxu0 %v1224
    %1252 = vmatprep.subr.bf16.mxu0 0
    %1253 = vmatpush1.bf16.msra.mxu0 %v1223
    %1254 = vmatprep.subr.bf16.mxu0 0
    %1255 = vmatpush1.bf16.msra.mxu0 %v1222
    %1256 = vmatprep.subr.bf16.mxu0 0
    %1257 = vmatpush1.bf16.msra.mxu0 %v1221
    %1258 = vmatprep.subr.bf16.mxu0 0
    %1259 = vmatpush1.bf16.msra.mxu0 %v1220
    %1260 = vmatprep.subr.bf16.mxu0 0
    %1261 = vmatpush1.bf16.msra.mxu0 %v1219
    %1262 = vmatprep.subr.bf16.mxu0 0
    %1263 = vmatpush2.bf16.msra.mxu0 0
    %1264 = vmatprep.subr.bf16.mxu0 0
    %1265 = vmatpush2.bf16.msra.mxu0 0
    %1266 = vmatprep.subr.bf16.mxu0 0
    %1267 = vmatpush2.bf16.msra.mxu0 0
    %1268 = vmatprep.subr.bf16.mxu0 0
    %1269 = vmatpush2.bf16.msra.mxu0 0
    %1270 = vmatprep.subr.bf16.mxu0 0
    %1271 = vmatpush2.bf16.msra.mxu0 %v1230
    %1272 = vmatprep.subr.bf16.mxu0 0
    %1273 = vmatpush2.bf16.msra.mxu0 %v1229
    %1274 = vmatprep.subr.bf16.mxu0 0
    %1275 = vmatpush2.bf16.msra.mxu0 %v1228
    %1276 = vmatprep.subr.bf16.mxu0 0
    %1277 = vmatpush2.bf16.msra.mxu0 %v1227
    %1278 = vmatprep.mubr.bf16.mxu0 %v1244
    %1279 = vmatmul.mubr.bf16.gmra.mxu0 %v281
    %v1280 = vpop.f32.mrf.mxu0
    %v1281 = vadd.f32 0.0, %v1280
    %v1282 = vpop.f32.mrf.mxu0
    %v1283 = vpop.f32.mrf.mxu0
    %v1284 = vadd.f32 0.0, %v1283
    %v1285 = vpop.f32.mrf.mxu0
    %1286 = vdwg.mxu0
    %v1287 = vadd.f32 %v1144, %v1281
    %v1288 = vadd.f32 %v1145, %v1284
    %v1289 = vpack.c.bf16 %v1288, %v1287
    %v1291 = vshrl.u32 %v1289, 16
    %v1293 = vrot.slane %v1291, 3
    %v1294 = vshll.u32 %v1289, 16
    %v1296 = vrot.slane %v1294, 4
    %v1297 = vor.u32 %v1293, %v1296
    %vm1299 = vcmask 1040384
    %vm1300 = vsmask.f32 256
    %vm1301 = vmand %vm1299, %vm1300
    %v1302 = vsel %vm1301, 0, %v1297
    %v1304 = vrot.slane %v1289, 4
    %vm1306 = vcmask 1043456
    %vm1307 = vsmask.f32 3328
    %vm1308 = vmand %vm1306, %vm1307
    %v1309 = vsel %vm1308, %v1304, 0
    %v1310 = vld [vmem:[#allocation4] sm:$0xff]
    %v1311 = vld [vmem:[#allocation4 + $0x8] sm:$0xff]
    %v1312 = vld [vmem:[#allocation4 + $0x10] sm:$0xff]
    %v1313 = vld [vmem:[#allocation4 + $0x18] sm:$0xff]
    %v1314 = vld [vmem:[%s5] sm:$0x3]
    %v1316 = vlaneseq
    %v1317 = vshrl.u32 %v1316, 7
    %v1318 = vsub.s32 0, %v1317
    %v1319 = vrot.slane %v1314, %v1318
    %v1320 = vlaneseq
    %v1321 = vshrl.u32 %v1320, 7
    %v1322 = vsub.s32 1, %v1321
    %v1323 = vrot.slane %v1314, %v1322
    %v1330 = vunpack.c.l.b16 %v1310
    %v1331 = vunpack.c.h.b16 %v1310
    %v1332 = vunpack.c.l.b16 %v1311
    %v1333 = vunpack.c.h.b16 %v1311
    %v1334 = vunpack.c.l.b16 %v1312
    %v1335 = vunpack.c.h.b16 %v1312
    %v1336 = vunpack.c.l.b16 %v1313
    %v1337 = vunpack.c.h.b16 %v1313
    %v1338 = vpack.c.b16 %v1332, %v1330
    %v1339 = vpack.c.b16 %v1333, %v1331
    %v1340 = vpack.c.b16 %v1336, %v1334
    %v1341 = vpack.c.b16 %v1337, %v1335
    %v1347 = vsel %vm144, %v1302, 0
    %1349 = vmatprep.subr.bf16.mxu0 0
    %1350 = vmatpush1.bf16.msra.mxu0 0
    %1351 = vmatprep.subr.bf16.mxu0 0
    %1352 = vmatpush1.bf16.msra.mxu0 0
    %1353 = vmatprep.subr.bf16.mxu0 0
    %1354 = vmatpush1.bf16.msra.mxu0 0
    %1355 = vmatprep.subr.bf16.mxu0 0
    %1356 = vmatpush1.bf16.msra.mxu0 0
    %1357 = vmatprep.subr.bf16.mxu0 0
    %1358 = vmatpush1.bf16.msra.mxu0 0
    %1359 = vmatprep.subr.bf16.mxu0 0
    %1360 = vmatpush1.bf16.msra.mxu0 0
    %1361 = vmatprep.subr.bf16.mxu0 %v1341
    %1362 = vmatpush1.bf16.msra.mxu0 %v1340
    %1363 = vmatprep.subr.bf16.mxu0 %v1339
    %1364 = vmatpush1.bf16.msra.mxu0 %v1338
    %1365 = vmatprep.subr.bf16.mxu0 0
    %1366 = vmatpush2.bf16.msra.mxu0 0
    %1367 = vmatprep.subr.bf16.mxu0 0
    %1368 = vmatpush2.bf16.msra.mxu0 0
    %1369 = vmatprep.subr.bf16.mxu0 0
    %1370 = vmatpush2.bf16.msra.mxu0 0
    %1371 = vmatprep.subr.bf16.mxu0 0
    %1372 = vmatpush2.bf16.msra.mxu0 0
    %1373 = vmatprep.subr.bf16.mxu0 0
    %1374 = vmatpush2.bf16.msra.mxu0 0
    %1375 = vmatprep.subr.bf16.mxu0 0
    %1376 = vmatpush2.bf16.msra.mxu0 0
    %1377 = vmatprep.subr.bf16.mxu0 0
    %1378 = vmatpush2.bf16.msra.mxu0 0
    %1379 = vmatprep.subr.bf16.mxu0 0
    %1380 = vmatpush2.bf16.msra.mxu0 0
    %1381 = vmatprep.mubr.bf16.mxu0 0
    %1382 = vmatmul.mubr.bf16.gmra.mxu0 %v1347
    %v1383 = vpop.f32.mrf.mxu0
    %v1384 = vadd.f32 %v1319, %v1383
    %v1385 = vpop.f32.mrf.mxu0
    %v1386 = vadd.f32 %v1323, %v1385
    %v1387 = vpop.f32.mrf.mxu0
    %v1388 = vpop.f32.mrf.mxu0
    %1389 = vdwg.mxu0
    %s1390 = scalar_lea.vmem [#allocation4], 32
    %v1391 = vld [vmem:[%s1390] sm:$0xff]
    %v1392 = vld [vmem:[%s1390 + $0x8] sm:$0xff]
    %v1393 = vld [vmem:[%s1390 + $0x10] sm:$0xff]
    %v1394 = vld [vmem:[%s1390 + $0x18] sm:$0xff]
    %v1399 = vunpack.c.l.b16 %v1391
    %v1400 = vunpack.c.h.b16 %v1391
    %v1401 = vunpack.c.l.b16 %v1392
    %v1402 = vunpack.c.h.b16 %v1392
    %v1403 = vunpack.c.l.b16 %v1393
    %v1404 = vunpack.c.h.b16 %v1393
    %v1405 = vunpack.c.l.b16 %v1394
    %v1406 = vunpack.c.h.b16 %v1394
    %v1407 = vpack.c.b16 %v1401, %v1399
    %v1408 = vpack.c.b16 %v1402, %v1400
    %v1409 = vpack.c.b16 %v1405, %v1403
    %v1410 = vpack.c.b16 %v1406, %v1404
    %v1415 = vsel %vm144, %v1289, 0
    %1417 = vmatprep.subr.bf16.mxu0 0
    %1418 = vmatpush1.bf16.msra.mxu0 0
    %1419 = vmatprep.subr.bf16.mxu0 0
    %1420 = vmatpush1.bf16.msra.mxu0 0
    %1421 = vmatprep.subr.bf16.mxu0 0
    %1422 = vmatpush1.bf16.msra.mxu0 0
    %1423 = vmatprep.subr.bf16.mxu0 0
    %1424 = vmatpush1.bf16.msra.mxu0 0
    %1425 = vmatprep.subr.bf16.mxu0 0
    %1426 = vmatpush1.bf16.msra.mxu0 0
    %1427 = vmatprep.subr.bf16.mxu0 0
    %1428 = vmatpush1.bf16.msra.mxu0 0
    %1429 = vmatprep.subr.bf16.mxu0 %v1410
    %1430 = vmatpush1.bf16.msra.mxu0 %v1409
    %1431 = vmatprep.subr.bf16.mxu0 %v1408
    %1432 = vmatpush1.bf16.msra.mxu0 %v1407
    %1433 = vmatprep.subr.bf16.mxu0 0
    %1434 = vmatpush2.bf16.msra.mxu0 0
    %1435 = vmatprep.subr.bf16.mxu0 0
    %1436 = vmatpush2.bf16.msra.mxu0 0
    %1437 = vmatprep.subr.bf16.mxu0 0
    %1438 = vmatpush2.bf16.msra.mxu0 0
    %1439 = vmatprep.subr.bf16.mxu0 0
    %1440 = vmatpush2.bf16.msra.mxu0 0
    %1441 = vmatprep.subr.bf16.mxu0 0
    %1442 = vmatpush2.bf16.msra.mxu0 0
    %1443 = vmatprep.subr.bf16.mxu0 0
    %1444 = vmatpush2.bf16.msra.mxu0 0
    %1445 = vmatprep.subr.bf16.mxu0 0
    %1446 = vmatpush2.bf16.msra.mxu0 0
    %1447 = vmatprep.subr.bf16.mxu0 0
    %1448 = vmatpush2.bf16.msra.mxu0 0
    %1449 = vmatprep.mubr.bf16.mxu0 0
    %1450 = vmatmul.mubr.bf16.gmra.mxu0 %v1415
    %v1451 = vpop.f32.mrf.mxu0
    %v1452 = vadd.f32 0.0, %v1451
    %v1453 = vpop.f32.mrf.mxu0
    %v1454 = vadd.f32 0.0, %v1453
    %v1455 = vpop.f32.mrf.mxu0
    %v1456 = vpop.f32.mrf.mxu0
    %1457 = vdwg.mxu0
    %v1458 = vadd.f32 %v1384, %v1452
    %v1459 = vadd.f32 %v1386, %v1454
    %s1460 = scalar_lea.vmem [#allocation4], 64
    %v1461 = vld [vmem:[%s1460] sm:$0xff]
    %v1462 = vld [vmem:[%s1460 + $0x8] sm:$0xff]
    %v1463 = vld [vmem:[%s1460 + $0x10] sm:$0xff]
    %v1464 = vld [vmem:[%s1460 + $0x18] sm:$0xff]
    %v1469 = vunpack.c.l.b16 %v1461
    %v1470 = vunpack.c.h.b16 %v1461
    %v1471 = vunpack.c.l.b16 %v1462
    %v1472 = vunpack.c.h.b16 %v1462
    %v1473 = vunpack.c.l.b16 %v1463
    %v1474 = vunpack.c.h.b16 %v1463
    %v1475 = vunpack.c.l.b16 %v1464
    %v1476 = vunpack.c.h.b16 %v1464
    %v1477 = vpack.c.b16 %v1471, %v1469
    %v1478 = vpack.c.b16 %v1472, %v1470
    %v1479 = vpack.c.b16 %v1475, %v1473
    %v1480 = vpack.c.b16 %v1476, %v1474
    %v1486 = vsel %vm144, %v1309, 0
    %1488 = vmatprep.subr.bf16.mxu0 0
    %1489 = vmatpush1.bf16.msra.mxu0 0
    %1490 = vmatprep.subr.bf16.mxu0 0
    %1491 = vmatpush1.bf16.msra.mxu0 0
    %1492 = vmatprep.subr.bf16.mxu0 0
    %1493 = vmatpush1.bf16.msra.mxu0 0
    %1494 = vmatprep.subr.bf16.mxu0 0
    %1495 = vmatpush1.bf16.msra.mxu0 0
    %1496 = vmatprep.subr.bf16.mxu0 0
    %1497 = vmatpush1.bf16.msra.mxu0 0
    %1498 = vmatprep.subr.bf16.mxu0 0
    %1499 = vmatpush1.bf16.msra.mxu0 0
    %1500 = vmatprep.subr.bf16.mxu0 %v1480
    %1501 = vmatpush1.bf16.msra.mxu0 %v1479
    %1502 = vmatprep.subr.bf16.mxu0 %v1478
    %1503 = vmatpush1.bf16.msra.mxu0 %v1477
    %1504 = vmatprep.subr.bf16.mxu0 0
    %1505 = vmatpush2.bf16.msra.mxu0 0
    %1506 = vmatprep.subr.bf16.mxu0 0
    %1507 = vmatpush2.bf16.msra.mxu0 0
    %1508 = vmatprep.subr.bf16.mxu0 0
    %1509 = vmatpush2.bf16.msra.mxu0 0
    %1510 = vmatprep.subr.bf16.mxu0 0
    %1511 = vmatpush2.bf16.msra.mxu0 0
    %1512 = vmatprep.subr.bf16.mxu0 0
    %1513 = vmatpush2.bf16.msra.mxu0 0
    %1514 = vmatprep.subr.bf16.mxu0 0
    %1515 = vmatpush2.bf16.msra.mxu0 0
    %1516 = vmatprep.subr.bf16.mxu0 0
    %1517 = vmatpush2.bf16.msra.mxu0 0
    %1518 = vmatprep.subr.bf16.mxu0 0
    %1519 = vmatpush2.bf16.msra.mxu0 0
    %1520 = vmatprep.mubr.bf16.mxu0 0
    %1521 = vmatmul.mubr.bf16.gmra.mxu0 %v1486
    %v1522 = vpop.f32.mrf.mxu0
    %v1523 = vadd.f32 0.0, %v1522
    %v1524 = vpop.f32.mrf.mxu0
    %v1525 = vadd.f32 0.0, %v1524
    %v1526 = vpop.f32.mrf.mxu0
    %v1527 = vpop.f32.mrf.mxu0
    %1528 = vdwg.mxu0
    %v1529 = vadd.f32 %v1458, %v1523
    %v1530 = vadd.f32 %v1459, %v1525
    %v1531 = vpack.c.bf16 %v1529, %v1529
    %v1532 = vpack.c.bf16 %v1530, %v1530
    %v1535 = vrot.slane %v1531, 7
    %v1536 = vrot.slane %v1532, 7
    %vm1537 = vcmask 1040384
    %v1540 = vsel %vm1537, 0, %v1535
    %v1542 = vsel %vm1537, 0, %v1536
    %vm1543 = vcmask 1044480
    %v1544 = vsel %vm1543, %v1540, 0
    %v1546 = vsel %vm1543, %v1542, 0
    %v1547 = vld [vmem:[#allocation6] sm:$0xf]
    %v1548 = vld [vmem:[#allocation6 + $0x4] sm:$0xf]
    %v1549 = vld [vmem:[#allocation6 + $0x8] sm:$0xf]
    %v1550 = vld [vmem:[#allocation6 + $0xc] sm:$0xf]
    %v1551 = vld [vmem:[#allocation6 + $0x10] sm:$0xf]
    %v1552 = vld [vmem:[#allocation6 + $0x14] sm:$0xf]
    %v1553 = vld [vmem:[#allocation6 + $0x18] sm:$0xf]
    %v1554 = vld [vmem:[#allocation6 + $0x1c] sm:$0xf]
    %v1555 = vld [vmem:[#allocation6 + $0x20] sm:$0xf]
    %v1556 = vld [vmem:[#allocation6 + $0x24] sm:$0xf]
    %v1557 = vld [vmem:[#allocation6 + $0x28] sm:$0xf]
    %v1558 = vld [vmem:[#allocation6 + $0x2c] sm:$0xf]
    %v1559 = vld [vmem:[#allocation6 + $0x30] sm:$0xf]
    %v1560 = vld [vmem:[#allocation6 + $0x34] sm:$0xf]
    %v1561 = vld [vmem:[#allocation6 + $0x38] sm:$0xf]
    %v1562 = vld [vmem:[#allocation6 + $0x3c] sm:$0xf]
    %v1563 = vld [vmem:[#allocation6 + $0x40] sm:$0xf]
    %v1564 = vld [vmem:[#allocation6 + $0x44] sm:$0xf]
    %v1565 = vld [vmem:[#allocation6 + $0x48] sm:$0xf]
    %v1566 = vld [vmem:[#allocation6 + $0x4c] sm:$0xf]
    %v1567 = vld [vmem:[%s7] sm:$0x1]
    %v1569 = vlaneseq
    %v1570 = vshrl.u32 %v1569, 7
    %v1571 = vsub.s32 0, %v1570
    %v1572 = vrot.slane %v1567, %v1571
    %v1594 = vunpack.c.l.b16 %v1547
    %v1595 = vunpack.c.l.b16 %v1548
    %v1596 = vunpack.c.l.b16 %v1549
    %v1597 = vunpack.c.l.b16 %v1550
    %v1598 = vunpack.c.l.b16 %v1551
    %v1599 = vunpack.c.l.b16 %v1552
    %v1600 = vunpack.c.l.b16 %v1553
    %v1601 = vunpack.c.l.b16 %v1554
    %v1602 = vunpack.c.l.b16 %v1555
    %v1603 = vunpack.c.l.b16 %v1556
    %v1604 = vunpack.c.l.b16 %v1557
    %v1605 = vunpack.c.l.b16 %v1558
    %v1606 = vunpack.c.l.b16 %v1559
    %v1607 = vunpack.c.l.b16 %v1560
    %v1608 = vunpack.c.l.b16 %v1561
    %v1609 = vunpack.c.l.b16 %v1562
    %v1610 = vunpack.c.l.b16 %v1563
    %v1611 = vunpack.c.l.b16 %v1564
    %v1612 = vunpack.c.l.b16 %v1565
    %v1613 = vunpack.c.l.b16 %v1566
    %v1614 = vpack.c.b16 %v1595, %v1594
    %v1615 = vpack.c.b16 %v1597, %v1596
    %v1616 = vpack.c.b16 %v1599, %v1598
    %v1617 = vpack.c.b16 %v1601, %v1600
    %v1618 = vpack.c.b16 %v1603, %v1602
    %v1619 = vpack.c.b16 %v1605, %v1604
    %v1620 = vpack.c.b16 %v1607, %v1606
    %v1621 = vpack.c.b16 %v1609, %v1608
    %v1622 = vpack.c.b16 %v1611, %v1610
    %v1623 = vpack.c.b16 %v1613, %v1612
    %v1634 = vsel %vm144, %v1546, 0
    %1636 = vmatprep.subr.bf16.mxu0 0
    %1637 = vmatpush1.bf16.msra.mxu0 %v1621
    %1638 = vmatprep.subr.bf16.mxu0 0
    %1639 = vmatpush1.bf16.msra.mxu0 %v1620
    %1640 = vmatprep.subr.bf16.mxu0 0
    %1641 = vmatpush1.bf16.msra.mxu0 %v1619
    %1642 = vmatprep.subr.bf16.mxu0 0
    %1643 = vmatpush1.bf16.msra.mxu0 %v1618
    %1644 = vmatprep.subr.bf16.mxu0 0
    %1645 = vmatpush1.bf16.msra.mxu0 %v1617
    %1646 = vmatprep.subr.bf16.mxu0 0
    %1647 = vmatpush1.bf16.msra.mxu0 %v1616
    %1648 = vmatprep.subr.bf16.mxu0 0
    %1649 = vmatpush1.bf16.msra.mxu0 %v1615
    %1650 = vmatprep.subr.bf16.mxu0 0
    %1651 = vmatpush1.bf16.msra.mxu0 %v1614
    %1652 = vmatprep.subr.bf16.mxu0 0
    %1653 = vmatpush2.bf16.msra.mxu0 0
    %1654 = vmatprep.subr.bf16.mxu0 0
    %1655 = vmatpush2.bf16.msra.mxu0 0
    %1656 = vmatprep.subr.bf16.mxu0 0
    %1657 = vmatpush2.bf16.msra.mxu0 0
    %1658 = vmatprep.subr.bf16.mxu0 0
    %1659 = vmatpush2.bf16.msra.mxu0 0
    %1660 = vmatprep.subr.bf16.mxu0 0
    %1661 = vmatpush2.bf16.msra.mxu0 0
    %1662 = vmatprep.subr.bf16.mxu0 0
    %1663 = vmatpush2.bf16.msra.mxu0 0
    %1664 = vmatprep.subr.bf16.mxu0 0
    %1665 = vmatpush2.bf16.msra.mxu0 %v1623
    %1666 = vmatprep.subr.bf16.mxu0 0
    %1667 = vmatpush2.bf16.msra.mxu0 %v1622
    %1668 = vmatprep.mubr.bf16.mxu0 %v1634
    %1669 = vmatmul.mubr.bf16.gmra.mxu0 %v1544
    %v1670 = vpop.f32.mrf.mxu0
    %v1671 = vadd.f32 %v1572, %v1670
    %v1672 = vpop.f32.mrf.mxu0
    %v1673 = vpop.f32.mrf.mxu0
    %v1674 = vpop.f32.mrf.mxu0
    %1675 = vdwg.mxu0
    %s1676 = scalar_lea.vmem [#allocation6], 80
    %v1677 = vld [vmem:[%s1676] sm:$0xf]
    %v1678 = vld [vmem:[%s1676 + $0x4] sm:$0xf]
    %v1679 = vld [vmem:[%s1676 + $0x8] sm:$0xf]
    %v1680 = vld [vmem:[%s1676 + $0xc] sm:$0xf]
    %v1681 = vld [vmem:[%s1676 + $0x10] sm:$0xf]
    %v1682 = vld [vmem:[%s1676 + $0x14] sm:$0xf]
    %v1683 = vld [vmem:[%s1676 + $0x18] sm:$0xf]
    %v1684 = vld [vmem:[%s1676 + $0x1c] sm:$0xf]
    %v1685 = vld [vmem:[%s1676 + $0x20] sm:$0xf]
    %v1686 = vld [vmem:[%s1676 + $0x24] sm:$0xf]
    %v1687 = vld [vmem:[%s1676 + $0x28] sm:$0xf]
    %v1688 = vld [vmem:[%s1676 + $0x2c] sm:$0xf]
    %v1689 = vld [vmem:[%s1676 + $0x30] sm:$0xf]
    %v1690 = vld [vmem:[%s1676 + $0x34] sm:$0xf]
    %v1691 = vld [vmem:[%s1676 + $0x38] sm:$0xf]
    %v1692 = vld [vmem:[%s1676 + $0x3c] sm:$0xf]
    %v1693 = vld [vmem:[%s1676 + $0x40] sm:$0xf]
    %v1694 = vld [vmem:[%s1676 + $0x44] sm:$0xf]
    %v1695 = vld [vmem:[%s1676 + $0x48] sm:$0xf]
    %v1696 = vld [vmem:[%s1676 + $0x4c] sm:$0xf]
    %v1697 = vshrl.u32 %v1544, 16
    %v1699 = vshll.u32 %v1544, 16
    %v1701 = vrot.slane %v1699, 1
    %v1702 = vor.u32 %v1697, %v1701
    %v1703 = vshrl.u32 %v1546, 16
    %v1705 = vshll.u32 %v1546, 16
    %v1707 = vrot.slane %v1705, 1
    %v1708 = vor.u32 %v1703, %v1707
    %v1730 = vunpack.c.l.b16 %v1677
    %v1731 = vunpack.c.l.b16 %v1678
    %v1732 = vunpack.c.l.b16 %v1679
    %v1733 = vunpack.c.l.b16 %v1680
    %v1734 = vunpack.c.l.b16 %v1681
    %v1735 = vunpack.c.l.b16 %v1682
    %v1736 = vunpack.c.l.b16 %v1683
    %v1737 = vunpack.c.l.b16 %v1684
    %v1738 = vunpack.c.l.b16 %v1685
    %v1739 = vunpack.c.l.b16 %v1686
    %v1740 = vunpack.c.l.b16 %v1687
    %v1741 = vunpack.c.l.b16 %v1688
    %v1742 = vunpack.c.l.b16 %v1689
    %v1743 = vunpack.c.l.b16 %v1690
    %v1744 = vunpack.c.l.b16 %v1691
    %v1745 = vunpack.c.l.b16 %v1692
    %v1746 = vunpack.c.l.b16 %v1693
    %v1747 = vunpack.c.l.b16 %v1694
    %v1748 = vunpack.c.l.b16 %v1695
    %v1749 = vunpack.c.l.b16 %v1696
    %v1750 = vpack.c.b16 %v1731, %v1730
    %v1751 = vpack.c.b16 %v1733, %v1732
    %v1752 = vpack.c.b16 %v1735, %v1734
    %v1753 = vpack.c.b16 %v1737, %v1736
    %v1754 = vpack.c.b16 %v1739, %v1738
    %v1755 = vpack.c.b16 %v1741, %v1740
    %v1756 = vpack.c.b16 %v1743, %v1742
    %v1757 = vpack.c.b16 %v1745, %v1744
    %v1758 = vpack.c.b16 %v1747, %v1746
    %v1759 = vpack.c.b16 %v1749, %v1748
    %v1771 = vsel %vm144, %v1708, 0
    %1773 = vmatprep.subr.bf16.mxu0 0
    %1774 = vmatpush1.bf16.msra.mxu0 %v1757
    %1775 = vmatprep.subr.bf16.mxu0 0
    %1776 = vmatpush1.bf16.msra.mxu0 %v1756
    %1777 = vmatprep.subr.bf16.mxu0 0
    %1778 = vmatpush1.bf16.msra.mxu0 %v1755
    %1779 = vmatprep.subr.bf16.mxu0 0
    %1780 = vmatpush1.bf16.msra.mxu0 %v1754
    %1781 = vmatprep.subr.bf16.mxu0 0
    %1782 = vmatpush1.bf16.msra.mxu0 %v1753
    %1783 = vmatprep.subr.bf16.mxu0 0
    %1784 = vmatpush1.bf16.msra.mxu0 %v1752
    %1785 = vmatprep.subr.bf16.mxu0 0
    %1786 = vmatpush1.bf16.msra.mxu0 %v1751
    %1787 = vmatprep.subr.bf16.mxu0 0
    %1788 = vmatpush1.bf16.msra.mxu0 %v1750
    %1789 = vmatprep.subr.bf16.mxu0 0
    %1790 = vmatpush2.bf16.msra.mxu0 0
    %1791 = vmatprep.subr.bf16.mxu0 0
    %1792 = vmatpush2.bf16.msra.mxu0 0
    %1793 = vmatprep.subr.bf16.mxu0 0
    %1794 = vmatpush2.bf16.msra.mxu0 0
    %1795 = vmatprep.subr.bf16.mxu0 0
    %1796 = vmatpush2.bf16.msra.mxu0 0
    %1797 = vmatprep.subr.bf16.mxu0 0
    %1798 = vmatpush2.bf16.msra.mxu0 0
    %1799 = vmatprep.subr.bf16.mxu0 0
    %1800 = vmatpush2.bf16.msra.mxu0 0
    %1801 = vmatprep.subr.bf16.mxu0 0
    %1802 = vmatpush2.bf16.msra.mxu0 %v1759
    %1803 = vmatprep.subr.bf16.mxu0 0
    %1804 = vmatpush2.bf16.msra.mxu0 %v1758
    %1805 = vmatprep.mubr.bf16.mxu0 %v1771
    %1806 = vmatmul.mubr.bf16.gmra.mxu0 %v1702
    %v1807 = vpop.f32.mrf.mxu0
    %v1808 = vadd.f32 0.0, %v1807
    %v1809 = vpop.f32.mrf.mxu0
    %v1810 = vpop.f32.mrf.mxu0
    %v1811 = vpop.f32.mrf.mxu0
    %1812 = vdwg.mxu0
    %v1813 = vadd.f32 %v1671, %v1808
    %s1814 = scalar_lea.vmem [#allocation6], 160
    %v1815 = vld [vmem:[%s1814] sm:$0xf]
    %v1816 = vld [vmem:[%s1814 + $0x4] sm:$0xf]
    %v1817 = vld [vmem:[%s1814 + $0x8] sm:$0xf]
    %v1818 = vld [vmem:[%s1814 + $0xc] sm:$0xf]
    %v1819 = vld [vmem:[%s1814 + $0x10] sm:$0xf]
    %v1820 = vld [vmem:[%s1814 + $0x14] sm:$0xf]
    %v1821 = vld [vmem:[%s1814 + $0x18] sm:$0xf]
    %v1822 = vld [vmem:[%s1814 + $0x1c] sm:$0xf]
    %v1823 = vld [vmem:[%s1814 + $0x20] sm:$0xf]
    %v1824 = vld [vmem:[%s1814 + $0x24] sm:$0xf]
    %v1825 = vld [vmem:[%s1814 + $0x28] sm:$0xf]
    %v1826 = vld [vmem:[%s1814 + $0x2c] sm:$0xf]
    %v1827 = vld [vmem:[%s1814 + $0x30] sm:$0xf]
    %v1828 = vld [vmem:[%s1814 + $0x34] sm:$0xf]
    %v1829 = vld [vmem:[%s1814 + $0x38] sm:$0xf]
    %v1830 = vld [vmem:[%s1814 + $0x3c] sm:$0xf]
    %v1831 = vld [vmem:[%s1814 + $0x40] sm:$0xf]
    %v1832 = vld [vmem:[%s1814 + $0x44] sm:$0xf]
    %v1833 = vld [vmem:[%s1814 + $0x48] sm:$0xf]
    %v1834 = vld [vmem:[%s1814 + $0x4c] sm:$0xf]
    %v1837 = vrot.slane %v1544, 1
    %v1838 = vrot.slane %v1546, 1
    %v1860 = vunpack.c.l.b16 %v1815
    %v1861 = vunpack.c.l.b16 %v1816
    %v1862 = vunpack.c.l.b16 %v1817
    %v1863 = vunpack.c.l.b16 %v1818
    %v1864 = vunpack.c.l.b16 %v1819
    %v1865 = vunpack.c.l.b16 %v1820
    %v1866 = vunpack.c.l.b16 %v1821
    %v1867 = vunpack.c.l.b16 %v1822
    %v1868 = vunpack.c.l.b16 %v1823
    %v1869 = vunpack.c.l.b16 %v1824
    %v1870 = vunpack.c.l.b16 %v1825
    %v1871 = vunpack.c.l.b16 %v1826
    %v1872 = vunpack.c.l.b16 %v1827
    %v1873 = vunpack.c.l.b16 %v1828
    %v1874 = vunpack.c.l.b16 %v1829
    %v1875 = vunpack.c.l.b16 %v1830
    %v1876 = vunpack.c.l.b16 %v1831
    %v1877 = vunpack.c.l.b16 %v1832
    %v1878 = vunpack.c.l.b16 %v1833
    %v1879 = vunpack.c.l.b16 %v1834
    %v1880 = vpack.c.b16 %v1861, %v1860
    %v1881 = vpack.c.b16 %v1863, %v1862
    %v1882 = vpack.c.b16 %v1865, %v1864
    %v1883 = vpack.c.b16 %v1867, %v1866
    %v1884 = vpack.c.b16 %v1869, %v1868
    %v1885 = vpack.c.b16 %v1871, %v1870
    %v1886 = vpack.c.b16 %v1873, %v1872
    %v1887 = vpack.c.b16 %v1875, %v1874
    %v1888 = vpack.c.b16 %v1877, %v1876
    %v1889 = vpack.c.b16 %v1879, %v1878
    %v1901 = vsel %vm144, %v1838, 0
    %1903 = vmatprep.subr.bf16.mxu0 0
    %1904 = vmatpush1.bf16.msra.mxu0 %v1887
    %1905 = vmatprep.subr.bf16.mxu0 0
    %1906 = vmatpush1.bf16.msra.mxu0 %v1886
    %1907 = vmatprep.subr.bf16.mxu0 0
    %1908 = vmatpush1.bf16.msra.mxu0 %v1885
    %1909 = vmatprep.subr.bf16.mxu0 0
    %1910 = vmatpush1.bf16.msra.mxu0 %v1884
    %1911 = vmatprep.subr.bf16.mxu0 0
    %1912 = vmatpush1.bf16.msra.mxu0 %v1883
    %1913 = vmatprep.subr.bf16.mxu0 0
    %1914 = vmatpush1.bf16.msra.mxu0 %v1882
    %1915 = vmatprep.subr.bf16.mxu0 0
    %1916 = vmatpush1.bf16.msra.mxu0 %v1881
    %1917 = vmatprep.subr.bf16.mxu0 0
    %1918 = vmatpush1.bf16.msra.mxu0 %v1880
    %1919 = vmatprep.subr.bf16.mxu0 0
    %1920 = vmatpush2.bf16.msra.mxu0 0
    %1921 = vmatprep.subr.bf16.mxu0 0
    %1922 = vmatpush2.bf16.msra.mxu0 0
    %1923 = vmatprep.subr.bf16.mxu0 0
    %1924 = vmatpush2.bf16.msra.mxu0 0
    %1925 = vmatprep.subr.bf16.mxu0 0
    %1926 = vmatpush2.bf16.msra.mxu0 0
    %1927 = vmatprep.subr.bf16.mxu0 0
    %1928 = vmatpush2.bf16.msra.mxu0 0
    %1929 = vmatprep.subr.bf16.mxu0 0
    %1930 = vmatpush2.bf16.msra.mxu0 0
    %1931 = vmatprep.subr.bf16.mxu0 0
    %1932 = vmatpush2.bf16.msra.mxu0 %v1889
    %1933 = vmatprep.subr.bf16.mxu0 0
    %1934 = vmatpush2.bf16.msra.mxu0 %v1888
    %1935 = vmatprep.mubr.bf16.mxu0 %v1901
    %1936 = vmatmul.mubr.bf16.gmra.mxu0 %v1837
    %v1937 = vpop.f32.mrf.mxu0
    %v1938 = vadd.f32 0.0, %v1937
    %v1939 = vpop.f32.mrf.mxu0
    %v1940 = vpop.f32.mrf.mxu0
    %v1941 = vpop.f32.mrf.mxu0
    %1942 = vdwg.mxu0
    %v1943 = vadd.f32 %v1813, %v1938
    %s1944 = scalar_lea.vmem [#allocation6], 240
    %v1945 = vld [vmem:[%s1944] sm:$0xf]
    %v1946 = vld [vmem:[%s1944 + $0x4] sm:$0xf]
    %v1947 = vld [vmem:[%s1944 + $0x8] sm:$0xf]
    %v1948 = vld [vmem:[%s1944 + $0xc] sm:$0xf]
    %v1949 = vld [vmem:[%s1944 + $0x10] sm:$0xf]
    %v1950 = vld [vmem:[%s1944 + $0x14] sm:$0xf]
    %v1951 = vld [vmem:[%s1944 + $0x18] sm:$0xf]
    %v1952 = vld [vmem:[%s1944 + $0x1c] sm:$0xf]
    %v1953 = vld [vmem:[%s1944 + $0x20] sm:$0xf]
    %v1954 = vld [vmem:[%s1944 + $0x24] sm:$0xf]
    %v1955 = vld [vmem:[%s1944 + $0x28] sm:$0xf]
    %v1956 = vld [vmem:[%s1944 + $0x2c] sm:$0xf]
    %v1957 = vld [vmem:[%s1944 + $0x30] sm:$0xf]
    %v1958 = vld [vmem:[%s1944 + $0x34] sm:$0xf]
    %v1959 = vld [vmem:[%s1944 + $0x38] sm:$0xf]
    %v1960 = vld [vmem:[%s1944 + $0x3c] sm:$0xf]
    %v1961 = vld [vmem:[%s1944 + $0x40] sm:$0xf]
    %v1962 = vld [vmem:[%s1944 + $0x44] sm:$0xf]
    %v1963 = vld [vmem:[%s1944 + $0x48] sm:$0xf]
    %v1964 = vld [vmem:[%s1944 + $0x4c] sm:$0xf]
    %v1965 = vrot.slane %v1697, 1
    %v1966 = vrot.slane %v1699, 2
    %v1967 = vor.u32 %v1965, %v1966
    %v1968 = vrot.slane %v1703, 1
    %v1969 = vrot.slane %v1705, 2
    %v1970 = vor.u32 %v1968, %v1969
    %v1992 = vunpack.c.l.b16 %v1945
    %v1993 = vunpack.c.l.b16 %v1946
    %v1994 = vunpack.c.l.b16 %v1947
    %v1995 = vunpack.c.l.b16 %v1948
    %v1996 = vunpack.c.l.b16 %v1949
    %v1997 = vunpack.c.l.b16 %v1950
    %v1998 = vunpack.c.l.b16 %v1951
    %v1999 = vunpack.c.l.b16 %v1952
    %v2000 = vunpack.c.l.b16 %v1953
    %v2001 = vunpack.c.l.b16 %v1954
    %v2002 = vunpack.c.l.b16 %v1955
    %v2003 = vunpack.c.l.b16 %v1956
    %v2004 = vunpack.c.l.b16 %v1957
    %v2005 = vunpack.c.l.b16 %v1958
    %v2006 = vunpack.c.l.b16 %v1959
    %v2007 = vunpack.c.l.b16 %v1960
    %v2008 = vunpack.c.l.b16 %v1961
    %v2009 = vunpack.c.l.b16 %v1962
    %v2010 = vunpack.c.l.b16 %v1963
    %v2011 = vunpack.c.l.b16 %v1964
    %v2012 = vpack.c.b16 %v1993, %v1992
    %v2013 = vpack.c.b16 %v1995, %v1994
    %v2014 = vpack.c.b16 %v1997, %v1996
    %v2015 = vpack.c.b16 %v1999, %v1998
    %v2016 = vpack.c.b16 %v2001, %v2000
    %v2017 = vpack.c.b16 %v2003, %v2002
    %v2018 = vpack.c.b16 %v2005, %v2004
    %v2019 = vpack.c.b16 %v2007, %v2006
    %v2020 = vpack.c.b16 %v2009, %v2008
    %v2021 = vpack.c.b16 %v2011, %v2010
    %v2033 = vsel %vm144, %v1970, 0
    %2035 = vmatprep.subr.bf16.mxu0 0
    %2036 = vmatpush1.bf16.msra.mxu0 %v2019
    %2037 = vmatprep.subr.bf16.mxu0 0
    %2038 = vmatpush1.bf16.msra.mxu0 %v2018
    %2039 = vmatprep.subr.bf16.mxu0 0
    %2040 = vmatpush1.bf16.msra.mxu0 %v2017
    %2041 = vmatprep.subr.bf16.mxu0 0
    %2042 = vmatpush1.bf16.msra.mxu0 %v2016
    %2043 = vmatprep.subr.bf16.mxu0 0
    %2044 = vmatpush1.bf16.msra.mxu0 %v2015
    %2045 = vmatprep.subr.bf16.mxu0 0
    %2046 = vmatpush1.bf16.msra.mxu0 %v2014
    %2047 = vmatprep.subr.bf16.mxu0 0
    %2048 = vmatpush1.bf16.msra.mxu0 %v2013
    %2049 = vmatprep.subr.bf16.mxu0 0
    %2050 = vmatpush1.bf16.msra.mxu0 %v2012
    %2051 = vmatprep.subr.bf16.mxu0 0
    %2052 = vmatpush2.bf16.msra.mxu0 0
    %2053 = vmatprep.subr.bf16.mxu0 0
    %2054 = vmatpush2.bf16.msra.mxu0 0
    %2055 = vmatprep.subr.bf16.mxu0 0
    %2056 = vmatpush2.bf16.msra.mxu0 0
    %2057 = vmatprep.subr.bf16.mxu0 0
    %2058 = vmatpush2.bf16.msra.mxu0 0
    %2059 = vmatprep.subr.bf16.mxu0 0
    %2060 = vmatpush2.bf16.msra.mxu0 0
    %2061 = vmatprep.subr.bf16.mxu0 0
    %2062 = vmatpush2.bf16.msra.mxu0 0
    %2063 = vmatprep.subr.bf16.mxu0 0
    %2064 = vmatpush2.bf16.msra.mxu0 %v2021
    %2065 = vmatprep.subr.bf16.mxu0 0
    %2066 = vmatpush2.bf16.msra.mxu0 %v2020
    %2067 = vmatprep.mubr.bf16.mxu0 %v2033
    %2068 = vmatmul.mubr.bf16.gmra.mxu0 %v1967
    %v2069 = vpop.f32.mrf.mxu0
    %v2070 = vadd.f32 0.0, %v2069
    %v2071 = vpop.f32.mrf.mxu0
    %v2072 = vpop.f32.mrf.mxu0
    %v2073 = vpop.f32.mrf.mxu0
    %2074 = vdwg.mxu0
    %v2075 = vadd.f32 %v1943, %v2070
    %s2076 = scalar_lea.vmem [#allocation6], 320
    %v2077 = vld [vmem:[%s2076] sm:$0xf]
    %v2078 = vld [vmem:[%s2076 + $0x4] sm:$0xf]
    %v2079 = vld [vmem:[%s2076 + $0x8] sm:$0xf]
    %v2080 = vld [vmem:[%s2076 + $0xc] sm:$0xf]
    %v2081 = vld [vmem:[%s2076 + $0x10] sm:$0xf]
    %v2082 = vld [vmem:[%s2076 + $0x14] sm:$0xf]
    %v2083 = vld [vmem:[%s2076 + $0x18] sm:$0xf]
    %v2084 = vld [vmem:[%s2076 + $0x1c] sm:$0xf]
    %v2085 = vld [vmem:[%s2076 + $0x20] sm:$0xf]
    %v2086 = vld [vmem:[%s2076 + $0x24] sm:$0xf]
    %v2087 = vld [vmem:[%s2076 + $0x28] sm:$0xf]
    %v2088 = vld [vmem:[%s2076 + $0x2c] sm:$0xf]
    %v2089 = vld [vmem:[%s2076 + $0x30] sm:$0xf]
    %v2090 = vld [vmem:[%s2076 + $0x34] sm:$0xf]
    %v2091 = vld [vmem:[%s2076 + $0x38] sm:$0xf]
    %v2092 = vld [vmem:[%s2076 + $0x3c] sm:$0xf]
    %v2093 = vld [vmem:[%s2076 + $0x40] sm:$0xf]
    %v2094 = vld [vmem:[%s2076 + $0x44] sm:$0xf]
    %v2095 = vld [vmem:[%s2076 + $0x48] sm:$0xf]
    %v2096 = vld [vmem:[%s2076 + $0x4c] sm:$0xf]
    %v2097 = vrot.slane %v1544, 2
    %v2098 = vrot.slane %v1546, 2
    %v2120 = vunpack.c.l.b16 %v2077
    %v2121 = vunpack.c.l.b16 %v2078
    %v2122 = vunpack.c.l.b16 %v2079
    %v2123 = vunpack.c.l.b16 %v2080
    %v2124 = vunpack.c.l.b16 %v2081
    %v2125 = vunpack.c.l.b16 %v2082
    %v2126 = vunpack.c.l.b16 %v2083
    %v2127 = vunpack.c.l.b16 %v2084
    %v2128 = vunpack.c.l.b16 %v2085
    %v2129 = vunpack.c.l.b16 %v2086
    %v2130 = vunpack.c.l.b16 %v2087
    %v2131 = vunpack.c.l.b16 %v2088
    %v2132 = vunpack.c.l.b16 %v2089
    %v2133 = vunpack.c.l.b16 %v2090
    %v2134 = vunpack.c.l.b16 %v2091
    %v2135 = vunpack.c.l.b16 %v2092
    %v2136 = vunpack.c.l.b16 %v2093
    %v2137 = vunpack.c.l.b16 %v2094
    %v2138 = vunpack.c.l.b16 %v2095
    %v2139 = vunpack.c.l.b16 %v2096
    %v2140 = vpack.c.b16 %v2121, %v2120
    %v2141 = vpack.c.b16 %v2123, %v2122
    %v2142 = vpack.c.b16 %v2125, %v2124
    %v2143 = vpack.c.b16 %v2127, %v2126
    %v2144 = vpack.c.b16 %v2129, %v2128
    %v2145 = vpack.c.b16 %v2131, %v2130
    %v2146 = vpack.c.b16 %v2133, %v2132
    %v2147 = vpack.c.b16 %v2135, %v2134
    %v2148 = vpack.c.b16 %v2137, %v2136
    %v2149 = vpack.c.b16 %v2139, %v2138
    %v2161 = vsel %vm144, %v2098, 0
    %2163 = vmatprep.subr.bf16.mxu0 0
    %2164 = vmatpush1.bf16.msra.mxu0 %v2147
    %2165 = vmatprep.subr.bf16.mxu0 0
    %2166 = vmatpush1.bf16.msra.mxu0 %v2146
    %2167 = vmatprep.subr.bf16.mxu0 0
    %2168 = vmatpush1.bf16.msra.mxu0 %v2145
    %2169 = vmatprep.subr.bf16.mxu0 0
    %2170 = vmatpush1.bf16.msra.mxu0 %v2144
    %2171 = vmatprep.subr.bf16.mxu0 0
    %2172 = vmatpush1.bf16.msra.mxu0 %v2143
    %2173 = vmatprep.subr.bf16.mxu0 0
    %2174 = vmatpush1.bf16.msra.mxu0 %v2142
    %2175 = vmatprep.subr.bf16.mxu0 0
    %2176 = vmatpush1.bf16.msra.mxu0 %v2141
    %2177 = vmatprep.subr.bf16.mxu0 0
    %2178 = vmatpush1.bf16.msra.mxu0 %v2140
    %2179 = vmatprep.subr.bf16.mxu0 0
    %2180 = vmatpush2.bf16.msra.mxu0 0
    %2181 = vmatprep.subr.bf16.mxu0 0
    %2182 = vmatpush2.bf16.msra.mxu0 0
    %2183 = vmatprep.subr.bf16.mxu0 0
    %2184 = vmatpush2.bf16.msra.mxu0 0
    %2185 = vmatprep.subr.bf16.mxu0 0
    %2186 = vmatpush2.bf16.msra.mxu0 0
    %2187 = vmatprep.subr.bf16.mxu0 0
    %2188 = vmatpush2.bf16.msra.mxu0 0
    %2189 = vmatprep.subr.bf16.mxu0 0
    %2190 = vmatpush2.bf16.msra.mxu0 0
    %2191 = vmatprep.subr.bf16.mxu0 0
    %2192 = vmatpush2.bf16.msra.mxu0 %v2149
    %2193 = vmatprep.subr.bf16.mxu0 0
    %2194 = vmatpush2.bf16.msra.mxu0 %v2148
    %2195 = vmatprep.mubr.bf16.mxu0 %v2161
    %2196 = vmatmul.mubr.bf16.gmra.mxu0 %v2097
    %v2197 = vpop.f32.mrf.mxu0
    %v2198 = vadd.f32 0.0, %v2197
    %v2199 = vpop.f32.mrf.mxu0
    %v2200 = vpop.f32.mrf.mxu0
    %v2201 = vpop.f32.mrf.mxu0
    %2202 = vdwg.mxu0
    %v2203 = vadd.f32 %v2075, %v2198
    %v2204 = vadd.f32 %v2203, 3.0
    %v2205 = vmax.f32 %v2204, 0.0
    %v2206 = vmin.f32 %v2205, 6.0
    %v2207 = vmul.f32 %v2203, %v2206
    %v2208 = vmul.f32 %v2207, 0.16666667
    %vm2209 = vcmask 392192
    %2210 = vst.msk [vmem:[%s8] sm:$0xff] %vm2209, %v2208
    // Predicated region
    $region46: #{forward.1} parent=1 // pred_check
      _
    $region47: #{forward.1} parent=1 // pred_check_branch
      %2212 = sbr.rel (0) target = $region49
    $region48: #{forward.1} parent=1 // pred_region
      _
    $region49: #{forward.1} parent=1 // pred_fallthru
      _
    // Predicated region
    $region50: #{forward.1} parent=1 // pred_check
      _
    $region51: #{forward.1} parent=1 // pred_check_branch
      %2214 = sbr.rel (0) target = $region53
    $region52: #{forward.1} parent=1 // pred_region
      _
    $region53: #{forward.1} parent=1 // pred_fallthru
      _
    %2215 = vsyncpa [#allocation3], 1
    %2216 = vsyncpa [#allocation5], 1

</llo_original>
